<compile_context>
chip_gen: v7x
topology: tpu7x:2x2x1
jax: 0.10.0
libtpu: 0.0.40
codegen_flags: <defaults>
</compile_context>

<pallas_src>
import jax
import jax.numpy as jnp
from jax.experimental import pallas as pl
from jax.experimental.pallas import tpu as pltpu


def _make_kernel(n_total, tn, channels, bias_offsets):
    c1, c2, c3, c4, c5 = channels
    o1, o2, o3, o4, o5 = bias_offsets
    need_mask = (n_total % tn) != 0

    def kernel(x_ref, w1_ref, w2_ref, w3_ref, w4_ref, w5_ref, b_ref, o_ref):
        nt = pl.program_id(1)

        x = x_ref[0].astype(jnp.float32)                      # (3, tn), lane-dense
        w1 = w1_ref[...]                                      # (c1, 3) f32, BN-scale folded

        # --- layer 1: Cin=3 -> three broadcasted VPU FMAs (skip a K=3 MXU pass)
        h = (w1[:, 0:1] * x[0:1, :]
             + w1[:, 1:2] * x[1:2, :]
             + w1[:, 2:3] * x[2:3, :])                        # (c1, tn) f32
        h = jnp.maximum(h + b_ref[o1:o1 + c1, :], 0.0)

        # --- layers 2-5: bf16 MXU matmul, f32 accumulation, f32 bias + ReLU
        def mxu_layer(h, w_ref, off, c):
            y = jnp.dot(w_ref[...], h.astype(w_ref.dtype),
                        preferred_element_type=jnp.float32)   # (c, tn) f32
            return jnp.maximum(y + b_ref[off:off + c, :], 0.0)

        h = mxu_layer(h, w2_ref, o2, c2)                      # (c2, tn)
        h = mxu_layer(h, w3_ref, o3, c3)                      # (c3, tn)
        h = mxu_layer(h, w4_ref, o4, c4)                      # (c4, tn)
        h = mxu_layer(h, w5_ref, o5, c5)                      # (pc, tn)

        # --- masked global max over this N tile
        if need_mask:
            col = jax.lax.broadcasted_iota(jnp.int32, (1, tn), 1) + nt * tn
            h = jnp.where(col < n_total, h, -jnp.inf)
        tile_max = jnp.max(h, axis=-1, keepdims=True)         # (pc, 1)

        # --- running max, accumulated in the resident output block
        @pl.when(nt == 0)
        def _():
            o_ref[0] = tile_max

        @pl.when(nt != 0)
        def _():
            o_ref[0] = jnp.maximum(o_ref[0], tile_max)

    return kernel


def pointnet_head_forward(x_ncw, folded_params, *, tn=512):
    """x_ncw: (B, 3, N) float32 (PyTorch NCW layout). Returns (B, pc_dims) f32."""
    B, c_in, N = x_ncw.shape
    assert c_in == 3
    w1, w2, w3, w4, w5, b_all = folded_params
    channels = (w1.shape[0], w2.shape[0], w3.shape[0], w4.shape[0], w5.shape[0])
    pc = channels[-1]

    offsets, off = [], 0
    for c in channels:
        offsets.append(off)
        off += c
    assert b_all.shape == (off, 1)

    if N <= tn:
        tn = N                         # single tile: block equals full extent
    else:
        assert tn % 128 == 0, "tn must be a multiple of 128 when tiling N"
    num_nt = pl.cdiv(N, tn)

    def const_spec(arr):
        return pl.BlockSpec(arr.shape, lambda b, nt: (0,) * arr.ndim)

    kernel = _make_kernel(N, tn, channels, tuple(offsets))
    out = pl.pallas_call(
        kernel,
        out_shape=jax.ShapeDtypeStruct((B, pc, 1), jnp.float32),
        grid_spec=pltpu.PrefetchScalarGridSpec(
            num_scalar_prefetch=0,
            grid=(B, num_nt),
            in_specs=[
                pl.BlockSpec((1, 3, tn), lambda b, nt: (b, 0, nt)),
                const_spec(w1), const_spec(w2), const_spec(w3),
                const_spec(w4), const_spec(w5), const_spec(b_all),
            ],
            out_specs=pl.BlockSpec((1, pc, 1), lambda b, nt: (b, 0, 0)),
        ),
        compiler_params=pltpu.CompilerParams(
            dimension_semantics=("parallel", "arbitrary")),
    )(x_ncw, w1, w2, w3, w4, w5, b_all)
    return out[:, :, 0]


def make_params(key, pc_dims=256):
    """Raw PyTorch-style params: per layer (conv_w (Cout,Cin), gamma, beta, mean, var)."""
    dims = [3, 64, 64, 64, 128, pc_dims]
    layers = []
    for i in range(5):
        c_in, c_out = dims[i], dims[i + 1]
        key, kw, kg, kb, km, kv = jax.random.split(key, 6)
        w = jax.random.normal(kw, (c_out, c_in), jnp.float32) / jnp.sqrt(c_in)
        gamma = 1.0 + 0.1 * jax.random.normal(kg, (c_out,), jnp.float32)
        beta = 0.1 * jax.random.normal(kb, (c_out,), jnp.float32)
        mean = 0.1 * jax.random.normal(km, (c_out,), jnp.float32)
        var = jax.random.uniform(kv, (c_out,), jnp.float32, minval=0.5, maxval=1.5)
        layers.append((w, gamma, beta, mean, var))
    return layers


def fold_params(layers, eps=1e-5, mxu_dtype=jnp.bfloat16):
    """Fold BN (eval mode) into the conv weights and one concatenated bias."""
    ws, bs = [], []
    for w, gamma, beta, mean, var in layers:
        scale = gamma / jnp.sqrt(var + eps)           # (Cout,)
        ws.append(w * scale[:, None])                 # (Cout, Cin), scale folded
        bs.append(beta - mean * scale)                # (Cout,)
    w1 = ws[0]                                        # stays f32 (VPU layer 1)
    w2, w3, w4, w5 = (w.astype(mxu_dtype) for w in ws[1:])
    b_all = jnp.concatenate(bs).reshape(-1, 1)        # (sum_Cout, 1) f32
    return (w1, w2, w3, w4, w5, b_all)


def _reference(x_ncw, layers, eps=1e-5, mxu_dtype=None):
    """Pure-JAX reference. mxu_dtype=bf16 mirrors the kernel's MXU casts."""
    h = x_ncw.astype(jnp.float32)                     # (B, 3, N)
    for i, (w, gamma, beta, mean, var) in enumerate(layers):
        scale = gamma / jnp.sqrt(var + eps)
        wf = w * scale[:, None]
        bf = beta - mean * scale
        if mxu_dtype is not None and i > 0:
            y = jnp.einsum("oc,bcn->bon", wf.astype(mxu_dtype), h.astype(mxu_dtype),
                           preferred_element_type=jnp.float32)
        else:
            y = jnp.einsum("oc,bcn->bon", wf, h, preferred_element_type=jnp.float32)
        h = jnp.maximum(y + bf[None, :, None], 0.0)
    return jnp.max(h, axis=-1)                        # (B, pc)


if __name__ == "__main__":
    key = jax.random.PRNGKey(0)
    k_x, k_p = jax.random.split(key)

    # Small shapes; N % TN != 0 exercises the ragged-tile masking and the
    # multi-tile running-max accumulator.
    B, N, PC_DIMS, TN = 2, 320, 256, 128
    x = jax.random.normal(k_x, (B, 3, N), jnp.float32)      # PyTorch NCW input
    layers = make_params(k_p, pc_dims=PC_DIMS)
    folded = fold_params(layers)

    out = pointnet_head_forward(x, folded, tn=TN)
    out = jax.block_until_ready(out)
    assert out.shape == (B, PC_DIMS)

    # Strict check vs. a reference applying the identical bf16 MXU casts.
    ref_matched = _reference(x, layers, mxu_dtype=jnp.bfloat16)
    assert jnp.allclose(out, ref_matched, atol=1e-3, rtol=1e-3), \
        float(jnp.max(jnp.abs(out - ref_matched)))

    # Loose semantic check vs. full-f32 math (difference is bf16 MXU rounding only).
    ref_f32 = _reference(x, layers)
    assert jnp.allclose(out, ref_f32, atol=1e-1, rtol=1e-1)

    print("KERNEL_OK")
</pallas_src>

<mosaic_0001>
module attributes {stable_mosaic.version = 11 : i64} {
  func.func @kernel(%arg0: i32, %arg1: i32, %arg2: memref<1x3x128xf32, #tpu.memory_space<vmem>>, %arg3: memref<64x3xf32, #tpu.memory_space<vmem>>, %arg4: memref<64x64xbf16, #tpu.memory_space<vmem>>, %arg5: memref<64x64xbf16, #tpu.memory_space<vmem>>, %arg6: memref<128x64xbf16, #tpu.memory_space<vmem>>, %arg7: memref<256x128xbf16, #tpu.memory_space<vmem>>, %arg8: memref<576x1xf32, #tpu.memory_space<vmem>>, %arg9: memref<1x256x1xf32, #tpu.memory_space<vmem>>) attributes {dimension_semantics = [#tpu.dimension_semantics<parallel>, #tpu.dimension_semantics<arbitrary>], iteration_bounds = array<i64: 2, 3>, scalar_prefetch = 0 : i64, scratch_operands = 0 : i64, tpu.core_type = #tpu.core_type<tc>, window_params = [{transform_indices = @transform_0, window_bounds = array<i64: 1, 3, 128>}, {pipeline_mode = #tpu.pipeline_mode<synchronous>, transform_indices = @transform_1, window_bounds = array<i64: 64, 3>}, {pipeline_mode = #tpu.pipeline_mode<synchronous>, transform_indices = @transform_2, window_bounds = array<i64: 64, 64>}, {pipeline_mode = #tpu.pipeline_mode<synchronous>, transform_indices = @transform_3, window_bounds = array<i64: 64, 64>}, {pipeline_mode = #tpu.pipeline_mode<synchronous>, transform_indices = @transform_4, window_bounds = array<i64: 128, 64>}, {pipeline_mode = #tpu.pipeline_mode<synchronous>, transform_indices = @transform_5, window_bounds = array<i64: 256, 128>}, {pipeline_mode = #tpu.pipeline_mode<synchronous>, transform_indices = @transform_6, window_bounds = array<i64: 576, 1>}, {transform_indices = @transform_7, window_bounds = array<i64: 1, 256, 1>}]} {
    %c0 = arith.constant 0 : index
    %c0_0 = arith.constant 0 : index
    %c0_1 = arith.constant 0 : index
    %0 = vector.load %arg2[%c0, %c0_0, %c0_1] : memref<1x3x128xf32, #tpu.memory_space<vmem>>, vector<1x3x128xf32>
    %1 = vector.shape_cast %0 : vector<1x3x128xf32> to vector<3x128xf32>
    %c0_2 = arith.constant 0 : index
    %c0_3 = arith.constant 0 : index
    %2 = vector.load %arg3[%c0_2, %c0_3] : memref<64x3xf32, #tpu.memory_space<vmem>>, vector<64x3xf32>
    %3 = vector.extract_strided_slice %2 {offsets = [0, 0], sizes = [64, 1], strides = [1, 1]} : vector<64x3xf32> to vector<64x1xf32>
    %4 = vector.extract_strided_slice %1 {offsets = [0, 0], sizes = [1, 128], strides = [1, 1]} : vector<3x128xf32> to vector<1x128xf32>
    %5 = vector.broadcast %3 : vector<64x1xf32> to vector<64x128xf32>
    %6 = vector.broadcast %4 : vector<1x128xf32> to vector<64x128xf32>
    %7 = arith.mulf %5, %6 : vector<64x128xf32>
    %8 = vector.extract_strided_slice %2 {offsets = [0, 1], sizes = [64, 1], strides = [1, 1]} : vector<64x3xf32> to vector<64x1xf32>
    %9 = vector.extract_strided_slice %1 {offsets = [1, 0], sizes = [1, 128], strides = [1, 1]} : vector<3x128xf32> to vector<1x128xf32>
    %10 = vector.broadcast %8 : vector<64x1xf32> to vector<64x128xf32>
    %11 = vector.broadcast %9 : vector<1x128xf32> to vector<64x128xf32>
    %12 = arith.mulf %10, %11 : vector<64x128xf32>
    %13 = arith.addf %7, %12 : vector<64x128xf32>
    %14 = vector.extract_strided_slice %2 {offsets = [0, 2], sizes = [64, 1], strides = [1, 1]} : vector<64x3xf32> to vector<64x1xf32>
    %15 = vector.extract_strided_slice %1 {offsets = [2, 0], sizes = [1, 128], strides = [1, 1]} : vector<3x128xf32> to vector<1x128xf32>
    %16 = vector.broadcast %14 : vector<64x1xf32> to vector<64x128xf32>
    %17 = vector.broadcast %15 : vector<1x128xf32> to vector<64x128xf32>
    %18 = arith.mulf %16, %17 : vector<64x128xf32>
    %19 = arith.addf %13, %18 : vector<64x128xf32>
    %c0_4 = arith.constant 0 : index
    %c0_5 = arith.constant 0 : index
    %20 = vector.load %arg8[%c0_4, %c0_5] : memref<576x1xf32, #tpu.memory_space<vmem>>, vector<64x1xf32>
    %21 = vector.broadcast %20 : vector<64x1xf32> to vector<64x128xf32>
    %22 = arith.addf %19, %21 : vector<64x128xf32>
    %cst = arith.constant 0.000000e+00 : f32
    %23 = vector.broadcast %cst : f32 to vector<64x128xf32>
    %24 = arith.maximumf %22, %23 : vector<64x128xf32>
    %c0_6 = arith.constant 0 : index
    %c0_7 = arith.constant 0 : index
    %25 = vector.load %arg4[%c0_6, %c0_7] : memref<64x64xbf16, #tpu.memory_space<vmem>>, vector<64x64xbf16>
    %26 = arith.truncf %24 : vector<64x128xf32> to vector<64x128xbf16>
    %cst_8 = arith.constant dense<0.000000e+00> : vector<64x128xf32>
    %27 = tpu.matmul %25, %26, %cst_8 {dimension_numbers = #tpu.dot_dimension_numbers<[1], [0], [0], [1], [0, 0, 1, 1], [], []>} : vector<64x64xbf16>, vector<64x128xbf16>, vector<64x128xf32> -> vector<64x128xf32>
    %c64 = arith.constant 64 : index
    %c0_9 = arith.constant 0 : index
    %28 = vector.load %arg8[%c64, %c0_9] : memref<576x1xf32, #tpu.memory_space<vmem>>, vector<64x1xf32>
    %29 = vector.broadcast %28 : vector<64x1xf32> to vector<64x128xf32>
    %30 = arith.addf %27, %29 : vector<64x128xf32>
    %cst_10 = arith.constant 0.000000e+00 : f32
    %31 = vector.broadcast %cst_10 : f32 to vector<64x128xf32>
    %32 = arith.maximumf %30, %31 : vector<64x128xf32>
    %c0_11 = arith.constant 0 : index
    %c0_12 = arith.constant 0 : index
    %33 = vector.load %arg5[%c0_11, %c0_12] : memref<64x64xbf16, #tpu.memory_space<vmem>>, vector<64x64xbf16>
    %34 = arith.truncf %32 : vector<64x128xf32> to vector<64x128xbf16>
    %cst_13 = arith.constant dense<0.000000e+00> : vector<64x128xf32>
    %35 = tpu.matmul %33, %34, %cst_13 {dimension_numbers = #tpu.dot_dimension_numbers<[1], [0], [0], [1], [0, 0, 1, 1], [], []>} : vector<64x64xbf16>, vector<64x128xbf16>, vector<64x128xf32> -> vector<64x128xf32>
    %c128 = arith.constant 128 : index
    %c0_14 = arith.constant 0 : index
    %36 = vector.load %arg8[%c128, %c0_14] : memref<576x1xf32, #tpu.memory_space<vmem>>, vector<64x1xf32>
    %37 = vector.broadcast %36 : vector<64x1xf32> to vector<64x128xf32>
    %38 = arith.addf %35, %37 : vector<64x128xf32>
    %cst_15 = arith.constant 0.000000e+00 : f32
    %39 = vector.broadcast %cst_15 : f32 to vector<64x128xf32>
    %40 = arith.maximumf %38, %39 : vector<64x128xf32>
    %c0_16 = arith.constant 0 : index
    %c0_17 = arith.constant 0 : index
    %41 = vector.load %arg6[%c0_16, %c0_17] : memref<128x64xbf16, #tpu.memory_space<vmem>>, vector<128x64xbf16>
    %42 = arith.truncf %40 : vector<64x128xf32> to vector<64x128xbf16>
    %cst_18 = arith.constant dense<0.000000e+00> : vector<128x128xf32>
    %43 = tpu.matmul %41, %42, %cst_18 {dimension_numbers = #tpu.dot_dimension_numbers<[1], [0], [0], [1], [0, 0, 1, 1], [], []>} : vector<128x64xbf16>, vector<64x128xbf16>, vector<128x128xf32> -> vector<128x128xf32>
    %c192 = arith.constant 192 : index
    %c0_19 = arith.constant 0 : index
    %44 = vector.load %arg8[%c192, %c0_19] : memref<576x1xf32, #tpu.memory_space<vmem>>, vector<128x1xf32>
    %45 = vector.broadcast %44 : vector<128x1xf32> to vector<128x128xf32>
    %46 = arith.addf %43, %45 : vector<128x128xf32>
    %cst_20 = arith.constant 0.000000e+00 : f32
    %47 = vector.broadcast %cst_20 : f32 to vector<128x128xf32>
    %48 = arith.maximumf %46, %47 : vector<128x128xf32>
    %c0_21 = arith.constant 0 : index
    %c0_22 = arith.constant 0 : index
    %49 = vector.load %arg7[%c0_21, %c0_22] : memref<256x128xbf16, #tpu.memory_space<vmem>>, vector<256x128xbf16>
    %50 = arith.truncf %48 : vector<128x128xf32> to vector<128x128xbf16>
    %cst_23 = arith.constant dense<0.000000e+00> : vector<256x128xf32>
    %51 = tpu.matmul %49, %50, %cst_23 {dimension_numbers = #tpu.dot_dimension_numbers<[1], [0], [0], [1], [0, 0, 1, 1], [], []>} : vector<256x128xbf16>, vector<128x128xbf16>, vector<256x128xf32> -> vector<256x128xf32>
    %c320 = arith.constant 320 : index
    %c0_24 = arith.constant 0 : index
    %52 = vector.load %arg8[%c320, %c0_24] : memref<576x1xf32, #tpu.memory_space<vmem>>, vector<256x1xf32>
    %53 = vector.broadcast %52 : vector<256x1xf32> to vector<256x128xf32>
    %54 = arith.addf %51, %53 : vector<256x128xf32>
    %cst_25 = arith.constant 0.000000e+00 : f32
    %55 = vector.broadcast %cst_25 : f32 to vector<256x128xf32>
    %56 = arith.maximumf %54, %55 : vector<256x128xf32>
    %57 = tpu.iota {dimensions = array<i32: 1>} : vector<1x128xi32>
    %c128_i32 = arith.constant 128 : i32
    %58 = arith.muli %arg1, %c128_i32 : i32
    %59 = vector.broadcast %58 : i32 to vector<1x128xi32>
    %60 = arith.addi %57, %59 : vector<1x128xi32>
    %c320_i32 = arith.constant 320 : i32
    %61 = vector.broadcast %c320_i32 : i32 to vector<1x128xi32>
    %62 = arith.cmpi slt, %60, %61 : vector<1x128xi32>
    %cst_26 = arith.constant 0xFF800000 : f32
    %63 = vector.shape_cast %62 : vector<1x128xi1> to vector<1x128xi1>
    %64 = vector.broadcast %63 : vector<1x128xi1> to vector<256x128xi1>
    %65 = vector.broadcast %cst_26 : f32 to vector<256x128xf32>
    %66 = arith.select %64, %56, %65 : vector<256x128xi1>, vector<256x128xf32>
    %cst_27 = arith.constant dense<0xFF800000> : vector<256xf32>
    %67 = vector.multi_reduction <maximumf>, %66, %cst_27 [1] : vector<256x128xf32> to vector<256xf32>
    %68 = vector.shape_cast %67 : vector<256xf32> to vector<256x1xf32>
    %c0_i32 = arith.constant 0 : i32
    %69 = arith.cmpi eq, %arg1, %c0_i32 : i32
    %70 = arith.extui %69 : i1 to i32
    %c0_i32_28 = arith.constant 0 : i32
    %71 = arith.cmpi ne, %70, %c0_i32_28 : i32
    scf.if %71 {
      %c0_31 = arith.constant 0 : index
      %c0_32 = arith.constant 0 : index
      %c0_33 = arith.constant 0 : index
      %75 = vector.load %arg9[%c0_31, %c0_32, %c0_33] : memref<1x256x1xf32, #tpu.memory_space<vmem>>, vector<1x256x1xf32>
      %76 = vector.shape_cast %75 : vector<1x256x1xf32> to vector<256x1xf32>
      %77 = vector.shape_cast %68 : vector<256x1xf32> to vector<1x256x1xf32>
      tpu.vector_store %arg9[%c0_31, %c0_32, %c0_33], %77 {strides = array<i32>} : memref<1x256x1xf32, #tpu.memory_space<vmem>>, vector<1x256x1xf32>,
    } else {
    }
    %c0_i32_29 = arith.constant 0 : i32
    %72 = arith.cmpi ne, %arg1, %c0_i32_29 : i32
    %73 = arith.extui %72 : i1 to i32
    %c0_i32_30 = arith.constant 0 : i32
    %74 = arith.cmpi ne, %73, %c0_i32_30 : i32
    scf.if %74 {
      %c0_31 = arith.constant 0 : index
      %c0_32 = arith.constant 0 : index
      %c0_33 = arith.constant 0 : index
      %75 = vector.load %arg9[%c0_31, %c0_32, %c0_33] : memref<1x256x1xf32, #tpu.memory_space<vmem>>, vector<1x256x1xf32>
      %76 = vector.shape_cast %75 : vector<1x256x1xf32> to vector<256x1xf32>
      %77 = arith.maximumf %76, %68 : vector<256x1xf32>
      %c0_34 = arith.constant 0 : index
      %c0_35 = arith.constant 0 : index
      %c0_36 = arith.constant 0 : index
      %78 = vector.load %arg9[%c0_34, %c0_35, %c0_36] : memref<1x256x1xf32, #tpu.memory_space<vmem>>, vector<1x256x1xf32>
      %79 = vector.shape_cast %78 : vector<1x256x1xf32> to vector<256x1xf32>
      %80 = vector.shape_cast %77 : vector<256x1xf32> to vector<1x256x1xf32>
      tpu.vector_store %arg9[%c0_34, %c0_35, %c0_36], %80 {strides = array<i32>} : memref<1x256x1xf32, #tpu.memory_space<vmem>>, vector<1x256x1xf32>,
    } else {
    }
    return
  }
  func.func @transform_0(%arg0: i32, %arg1: i32) -> (i32, i32, i32) {
    %c0_i32 = arith.constant 0 : i32
    %c0_i32_0 = arith.constant 0 : i32
    return %arg0, %c0_i32, %arg1 : i32, i32, i32
  }
  func.func @transform_1(%arg0: i32, %arg1: i32) -> (i32, i32) {
    %c0_i32 = arith.constant 0 : i32
    %c0_i32_0 = arith.constant 0 : i32
    %c0_i32_1 = arith.constant 0 : i32
    return %c0_i32, %c0_i32_0 : i32, i32
  }
  func.func @transform_2(%arg0: i32, %arg1: i32) -> (i32, i32) {
    %c0_i32 = arith.constant 0 : i32
    %c0_i32_0 = arith.constant 0 : i32
    %c0_i32_1 = arith.constant 0 : i32
    return %c0_i32, %c0_i32_0 : i32, i32
  }
  func.func @transform_3(%arg0: i32, %arg1: i32) -> (i32, i32) {
    %c0_i32 = arith.constant 0 : i32
    %c0_i32_0 = arith.constant 0 : i32
    %c0_i32_1 = arith.constant 0 : i32
    return %c0_i32, %c0_i32_0 : i32, i32
  }
  func.func @transform_4(%arg0: i32, %arg1: i32) -> (i32, i32) {
    %c0_i32 = arith.constant 0 : i32
    %c0_i32_0 = arith.constant 0 : i32
    %c0_i32_1 = arith.constant 0 : i32
    return %c0_i32, %c0_i32_0 : i32, i32
  }
  func.func @transform_5(%arg0: i32, %arg1: i32) -> (i32, i32) {
    %c0_i32 = arith.constant 0 : i32
    %c0_i32_0 = arith.constant 0 : i32
    %c0_i32_1 = arith.constant 0 : i32
    return %c0_i32, %c0_i32_0 : i32, i32
  }
  func.func @transform_6(%arg0: i32, %arg1: i32) -> (i32, i32) {
    %c0_i32 = arith.constant 0 : i32
    %c0_i32_0 = arith.constant 0 : i32
    %c0_i32_1 = arith.constant 0 : i32
    return %c0_i32, %c0_i32_0 : i32, i32
  }
  func.func @transform_7(%arg0: i32, %arg1: i32) -> (i32, i32, i32) {
    %c0_i32 = arith.constant 0 : i32
    %c0_i32_0 = arith.constant 0 : i32
    %c0_i32_1 = arith.constant 0 : i32
    return %arg0, %c0_i32, %c0_i32_0 : i32, i32, i32
  }
}

</mosaic_0001>

<llo_original>
// kernel: tpu_custom_call.1
$region0: #{tpu_custom_call.1}
  #allocation0 [shape = 'u32[]', space=smem, size = 0x4, offset = 0x4, fixed_abs, tag = 'smem constant byte address 0x4 - core index']
  #allocation1 [shape = 'u32[144,128]{1,0:T(1,128)}', space=vmem, size = 0x12000, scoped, tag = 'internal scratch']
  %s0 = inlined_call_operand.vmem [shape: f32[2,3,320], index: 0, kind: input, shape index: {}]
  %s1 = inlined_call_operand.vmem [shape: f32[64,3], index: 1, kind: input, shape index: {}]
  %s2 = inlined_call_operand.vmem [shape: bf16[64,64], index: 2, kind: input, shape index: {}]
  %s3 = inlined_call_operand.vmem [shape: bf16[64,64], index: 3, kind: input, shape index: {}]
  %s4 = inlined_call_operand.vmem [shape: bf16[128,64], index: 4, kind: input, shape index: {}]
  %s5 = inlined_call_operand.vmem [shape: bf16[256,128], index: 5, kind: input, shape index: {}]
  %s6 = inlined_call_operand.vmem [shape: f32[576,1], index: 6, kind: input, shape index: {}]
  %s7 = inlined_call_operand.vmem [shape: f32[2,256,1], index: 7, kind: output, shape index: {}]
  %s8 = sld [smem:[#allocation0]]
  $region69: #{tpu_custom_call.1} parent=0
    _
  %s10 = ssub.s32 1, %s8
  %s11 = scalar_select 0, %s10, %s8
  loop: start=0, step=1, limit=8
  $region2: #{tpu_custom_call.1} parent=0 // loop_pre_header
    _
  $region3: #{tpu_custom_call.1} parent=0 // loop_header
    %s13 = sphi 0, %s17
    %p14 = scmp.ge.s32.totalorder %s13, 8
    %s20 = sphi 0, %s32
    %s21 = sphi 0, %s28
    %s22 = sphi 0, %s20
    %s23 = sphi 0, %s21
    %s24 = sphi 0, %s22
    %s25 = sphi 0, %s23
    %s37 = sphi 0, %s39
    %s40 = sphi 0, %s37
    %s41 = sphi 0, %s40
    %s57 = sphi 0, %s41
    %s61 = sphi 0, %s61
    %s63 = sphi 0, %s61
    %s64 = sphi 0, %s63
    %s78 = sphi 0, %s64
    %s82 = sphi 0, %s82
    %s84 = sphi 0, %s82
    %s85 = sphi 0, %s84
    %s99 = sphi 0, %s85
    %s103 = sphi 0, %s103
    %s105 = sphi 0, %s103
    %s106 = sphi 0, %s105
    %s120 = sphi 0, %s106
    %s124 = sphi 0, %s124
    %s126 = sphi 0, %s124
    %s127 = sphi 0, %s126
    %s141 = sphi 0, %s127
    %s145 = sphi 0, %s145
    %s147 = sphi 0, %s145
    %s148 = sphi 0, %s147
    %s162 = sphi 0, %s148
    %s166 = sphi 0, %s166
    %s168 = sphi 0, %s166
    %s169 = sphi 0, %s168
    %s183 = sphi 0, %s169
    %s189 = sphi 0, %s191
    %s192 = sphi 0, %s189
    %s193 = sphi 0, %s192
    %s209 = sphi 0, %s193
  $region4: #{tpu_custom_call.1} parent=0 // loop_header_branch
    %16 = sbr.rel (%p14) target = $region8
  $region5: #{tpu_custom_call.1} parent=0 // loop_body
    %s18 = ssub.s32 %s13, 1
    %s19 = ssub.s32 %s13, 2
    %s26 = sadd.s32 1, %s21
    %p27 = scmp.ge.s32.totalorder %s26, 3
    %s28 = scalar_select %p27, 0, %s26
    %s29 = sadd.s32 1, %s20
    %s30 = scalar_select %p27, %s29, %s20
    %p31 = scmp.ge.s32.totalorder %s30, 2
    %s32 = scalar_select %p31, 0, %s30
    %s33 = ssub.s32 %s20, %s32
    %s34 = ssub.s32 %s21, %s28
    %s35 = sor.u32 %s33, %s34
    %p36 = scmp.eq.s32.totalorder %s35, 0
    %s38 = sadd.s32 %s37, 1
    %s39 = scalar_select %p36, %s37, %s38
    %p42 = pneg %p36
    %p43 = scmp.eq.s32.totalorder %s13, 5
    %p44 = por %p42, %p43
    %p45 = scmp.ne.s32.totalorder %s37, %s40
    %p46 = scmp.eq.s32.totalorder %s13, 0
    %p47 = por %p45, %p46
    %p48 = scmp.ne.s32.totalorder %s37, %s40
    %p49 = scmp.eq.s32.totalorder %s18, 5
    %p50 = por %p48, %p49
    %p51 = scmp.ne.s32.totalorder %s40, %s41
    %p52 = scmp.eq.s32.totalorder %s18, 0
    %p53 = por %p51, %p52
    %p54 = scmp.ne.s32.totalorder %s40, %s41
    %p55 = scmp.eq.s32.totalorder %s19, 5
    %p56 = por %p54, %p55
    %p58 = scmp.ne.s32.totalorder %s41, %s57
    %p59 = scmp.eq.s32.totalorder %s19, 0
    %p60 = por %p58, %p59
    %s62 = sadd.s32 %s61, 1
    %p65 = scmp.eq.s32.totalorder %s13, 5
    %p66 = scmp.ne.s32.totalorder %s61, %s63
    %p67 = scmp.eq.s32.totalorder %s13, 0
    %p68 = por %p66, %p67
    %p69 = scmp.ne.s32.totalorder %s61, %s63
    %p70 = scmp.eq.s32.totalorder %s18, 5
    %p71 = por %p69, %p70
    %p72 = scmp.ne.s32.totalorder %s63, %s64
    %p73 = scmp.eq.s32.totalorder %s18, 0
    %p74 = por %p72, %p73
    %p75 = scmp.ne.s32.totalorder %s63, %s64
    %p76 = scmp.eq.s32.totalorder %s19, 5
    %p77 = por %p75, %p76
    %p79 = scmp.ne.s32.totalorder %s64, %s78
    %p80 = scmp.eq.s32.totalorder %s19, 0
    %p81 = por %p79, %p80
    %s83 = sadd.s32 %s82, 1
    %p86 = scmp.eq.s32.totalorder %s13, 5
    %p87 = scmp.ne.s32.totalorder %s82, %s84
    %p88 = scmp.eq.s32.totalorder %s13, 0
    %p89 = por %p87, %p88
    %p90 = scmp.ne.s32.totalorder %s82, %s84
    %p91 = scmp.eq.s32.totalorder %s18, 5
    %p92 = por %p90, %p91
    %p93 = scmp.ne.s32.totalorder %s84, %s85
    %p94 = scmp.eq.s32.totalorder %s18, 0
    %p95 = por %p93, %p94
    %p96 = scmp.ne.s32.totalorder %s84, %s85
    %p97 = scmp.eq.s32.totalorder %s19, 5
    %p98 = por %p96, %p97
    %p100 = scmp.ne.s32.totalorder %s85, %s99
    %p101 = scmp.eq.s32.totalorder %s19, 0
    %p102 = por %p100, %p101
    %s104 = sadd.s32 %s103, 1
    %p107 = scmp.eq.s32.totalorder %s13, 5
    %p108 = scmp.ne.s32.totalorder %s103, %s105
    %p109 = scmp.eq.s32.totalorder %s13, 0
    %p110 = por %p108, %p109
    %p111 = scmp.ne.s32.totalorder %s103, %s105
    %p112 = scmp.eq.s32.totalorder %s18, 5
    %p113 = por %p111, %p112
    %p114 = scmp.ne.s32.totalorder %s105, %s106
    %p115 = scmp.eq.s32.totalorder %s18, 0
    %p116 = por %p114, %p115
    %p117 = scmp.ne.s32.totalorder %s105, %s106
    %p118 = scmp.eq.s32.totalorder %s19, 5
    %p119 = por %p117, %p118
    %p121 = scmp.ne.s32.totalorder %s106, %s120
    %p122 = scmp.eq.s32.totalorder %s19, 0
    %p123 = por %p121, %p122
    %s125 = sadd.s32 %s124, 1
    %p128 = scmp.eq.s32.totalorder %s13, 5
    %p129 = scmp.ne.s32.totalorder %s124, %s126
    %p130 = scmp.eq.s32.totalorder %s13, 0
    %p131 = por %p129, %p130
    %p132 = scmp.ne.s32.totalorder %s124, %s126
    %p133 = scmp.eq.s32.totalorder %s18, 5
    %p134 = por %p132, %p133
    %p135 = scmp.ne.s32.totalorder %s126, %s127
    %p136 = scmp.eq.s32.totalorder %s18, 0
    %p137 = por %p135, %p136
    %p138 = scmp.ne.s32.totalorder %s126, %s127
    %p139 = scmp.eq.s32.totalorder %s19, 5
    %p140 = por %p138, %p139
    %p142 = scmp.ne.s32.totalorder %s127, %s141
    %p143 = scmp.eq.s32.totalorder %s19, 0
    %p144 = por %p142, %p143
    %s146 = sadd.s32 %s145, 1
    %p149 = scmp.eq.s32.totalorder %s13, 5
    %p150 = scmp.ne.s32.totalorder %s145, %s147
    %p151 = scmp.eq.s32.totalorder %s13, 0
    %p152 = por %p150, %p151
    %p153 = scmp.ne.s32.totalorder %s145, %s147
    %p154 = scmp.eq.s32.totalorder %s18, 5
    %p155 = por %p153, %p154
    %p156 = scmp.ne.s32.totalorder %s147, %s148
    %p157 = scmp.eq.s32.totalorder %s18, 0
    %p158 = por %p156, %p157
    %p159 = scmp.ne.s32.totalorder %s147, %s148
    %p160 = scmp.eq.s32.totalorder %s19, 5
    %p161 = por %p159, %p160
    %p163 = scmp.ne.s32.totalorder %s148, %s162
    %p164 = scmp.eq.s32.totalorder %s19, 0
    %p165 = por %p163, %p164
    %s167 = sadd.s32 %s166, 1
    %p170 = scmp.eq.s32.totalorder %s13, 5
    %p171 = scmp.ne.s32.totalorder %s166, %s168
    %p172 = scmp.eq.s32.totalorder %s13, 0
    %p173 = por %p171, %p172
    %p174 = scmp.ne.s32.totalorder %s166, %s168
    %p175 = scmp.eq.s32.totalorder %s18, 5
    %p176 = por %p174, %p175
    %p177 = scmp.ne.s32.totalorder %s168, %s169
    %p178 = scmp.eq.s32.totalorder %s18, 0
    %p179 = por %p177, %p178
    %p180 = scmp.ne.s32.totalorder %s168, %s169
    %p181 = scmp.eq.s32.totalorder %s19, 5
    %p182 = por %p180, %p181
    %p184 = scmp.ne.s32.totalorder %s169, %s183
    %p185 = scmp.eq.s32.totalorder %s19, 0
    %p186 = por %p184, %p185
    %s187 = ssub.s32 %s20, %s32
    %p188 = scmp.eq.s32.totalorder %s187, 0
    %s190 = sadd.s32 %s189, 1
    %s191 = scalar_select %p188, %s189, %s190
    %p194 = pneg %p188
    %p195 = scmp.eq.s32.totalorder %s13, 5
    %p196 = por %p194, %p195
    %p197 = scmp.ne.s32.totalorder %s189, %s192
    %p198 = scmp.eq.s32.totalorder %s13, 0
    %p199 = por %p197, %p198
    %p200 = scmp.ne.s32.totalorder %s189, %s192
    %p201 = scmp.eq.s32.totalorder %s18, 5
    %p202 = por %p200, %p201
    %p203 = scmp.ne.s32.totalorder %s192, %s193
    %p204 = scmp.eq.s32.totalorder %s18, 0
    %p205 = por %p203, %p204
    %p206 = scmp.ne.s32.totalorder %s192, %s193
    %p207 = scmp.eq.s32.totalorder %s19, 5
    %p208 = por %p206, %p207
    %p210 = scmp.ne.s32.totalorder %s193, %s209
    %p211 = scmp.eq.s32.totalorder %s19, 0
    %p212 = por %p210, %p211
    %p213 = scmp.le.s32.totalorder 1, %s13
    %p214 = scmp.lt.s32.totalorder %s13, 7
    %p215 = pnand %p213, %p214
    %p216 = pneg %p215
    // Predicated region
    $region9: #{tpu_custom_call.1} parent=5 // pred_check
      _
    $region10: #{tpu_custom_call.1} parent=5 // pred_check_branch
      %218 = sbr.rel (%p215) target = $region12
    $region11: #{tpu_custom_call.1} parent=5 // pred_region
      %s219 = ssub.s32 %s13, 1
      // Predicated region
      $region13: #{tpu_custom_call.1} parent=11 // pred_check
        %p220 = pneg %p74
      $region14: #{tpu_custom_call.1} parent=11 // pred_check_branch
        %222 = sbr.rel (%p220) target = $region16
      $region15: #{tpu_custom_call.1} parent=11 // pred_region
        _
      $region16: #{tpu_custom_call.1} parent=11 // pred_fallthru
        _
      // Predicated region
      $region17: #{tpu_custom_call.1} parent=11 // pred_check
        %p223 = pneg %p95
      $region18: #{tpu_custom_call.1} parent=11 // pred_check_branch
        %225 = sbr.rel (%p223) target = $region20
      $region19: #{tpu_custom_call.1} parent=11 // pred_region
        _
      $region20: #{tpu_custom_call.1} parent=11 // pred_fallthru
        _
      // Predicated region
      $region21: #{tpu_custom_call.1} parent=11 // pred_check
        %p226 = pneg %p116
      $region22: #{tpu_custom_call.1} parent=11 // pred_check_branch
        %228 = sbr.rel (%p226) target = $region24
      $region23: #{tpu_custom_call.1} parent=11 // pred_region
        _
      $region24: #{tpu_custom_call.1} parent=11 // pred_fallthru
        _
      // Predicated region
      $region25: #{tpu_custom_call.1} parent=11 // pred_check
        %p229 = pneg %p137
      $region26: #{tpu_custom_call.1} parent=11 // pred_check_branch
        %231 = sbr.rel (%p229) target = $region28
      $region27: #{tpu_custom_call.1} parent=11 // pred_region
        _
      $region28: #{tpu_custom_call.1} parent=11 // pred_fallthru
        _
      // Predicated region
      $region29: #{tpu_custom_call.1} parent=11 // pred_check
        %p232 = pneg %p158
      $region30: #{tpu_custom_call.1} parent=11 // pred_check_branch
        %234 = sbr.rel (%p232) target = $region32
      $region31: #{tpu_custom_call.1} parent=11 // pred_region
        _
      $region32: #{tpu_custom_call.1} parent=11 // pred_fallthru
        _
      // Predicated region
      $region33: #{tpu_custom_call.1} parent=11 // pred_check
        %p235 = pneg %p179
      $region34: #{tpu_custom_call.1} parent=11 // pred_check_branch
        %237 = sbr.rel (%p235) target = $region36
      $region35: #{tpu_custom_call.1} parent=11 // pred_region
        _
      $region36: #{tpu_custom_call.1} parent=11 // pred_fallthru
        _
    $region12: #{tpu_custom_call.1} parent=5 // pred_fallthru
      _
    %p238 = scmp.lt.s32.totalorder %s13, 6
    // Predicated region
    $region37: #{tpu_custom_call.1} parent=5 // pred_check
      %p239 = pneg %p238
    $region38: #{tpu_custom_call.1} parent=5 // pred_check_branch
      %241 = sbr.rel (%p239) target = $region40
    $region39: #{tpu_custom_call.1} parent=5 // pred_region
      // Predicated region
      $region41: #{tpu_custom_call.1} parent=39 // pred_check
        %p242 = pneg %p47
      $region42: #{tpu_custom_call.1} parent=39 // pred_check_branch
        %244 = sbr.rel (%p242) target = $region44
      $region43: #{tpu_custom_call.1} parent=39 // pred_region
        %p245 = scmp.lt.s32.totalorder %s20, 1
        %s246 = scalar_select %p245, %s20, 1
        %p247 = scmp.lt.s32.totalorder %s21, 2
        %s248 = scalar_select %p247, %s21, 2
        %s249 = smul.addr %s246, 3
        %s250 = sadd.s32 %s248, %s249
        %s251 = smul.addr %s250, 4
        %s252 = scalar_lea.vmem %s0, %s251
      $region44: #{tpu_custom_call.1} parent=39 // pred_fallthru
        _
    $region40: #{tpu_custom_call.1} parent=5 // pred_fallthru
      _
    %p253 = scmp.le.s32.totalorder 1, %s13
    %p254 = scmp.lt.s32.totalorder %s13, 7
    %p255 = pnand %p253, %p254
    %p256 = pneg %p255
    // Predicated region
    $region45: #{tpu_custom_call.1} parent=5 // pred_check
      _
    $region46: #{tpu_custom_call.1} parent=5 // pred_check_branch
      %258 = sbr.rel (%p255) target = $region48
    $region47: #{tpu_custom_call.1} parent=5 // pred_region
      %s259 = ssub.s32 %s13, 1
      %p260 = scmp.lt.s32.totalorder %s22, 1
      %s261 = scalar_select %p260, %s22, 1
      %p262 = scmp.lt.s32.totalorder %s23, 2
      %s263 = scalar_select %p262, %s23, 2
      %s264 = smul.addr %s261, 3
      %s265 = sadd.s32 %s263, %s264
      %s266 = smul.addr %s265, 4
      %s267 = scalar_lea.vmem %s0, %s266
      %p268 = pneg %p53
      %p269 = pneg %p50
      %p270 = pneg %p74
      %p271 = pneg %p71
      %p272 = pneg %p95
      %p273 = pneg %p92
      %p274 = pneg %p116
      %p275 = pneg %p113
      %p276 = pneg %p137
      %p277 = pneg %p134
      %p278 = pneg %p158
      %p279 = pneg %p155
      %p280 = pneg %p179
      %p281 = pneg %p176
      %p282 = pneg %p205
      %p283 = pneg %p202
      %p284 = scmp.lt.s32.totalorder %s22, 1
      %s285 = scalar_select %p284, %s22, 1
      %s286 = smul.addr %s285, 32
      %s287 = smul.addr %s286, 8
      %s288 = scalar_lea.vmem %s7, %s287
      %p289 = scmp.lt.s32.totalorder %s22, 1
      %s290 = scalar_select %p289, %s22, 1
      %p291 = scmp.lt.s32.totalorder %s23, 2
      %s292 = scalar_select %p291, %s23, 2
      %s293 = smul.addr %s290, 3
      %s294 = sadd.s32 %s292, %s293
      %s295 = smul.addr %s294, 4
      %s296 = scalar_lea.vmem %s0, %s295
      %p297 = scmp.lt.s32.totalorder %s22, 1
      %s298 = scalar_select %p297, %s22, 1
      %s299 = smul.addr %s298, 32
      %s300 = smul.addr %s299, 8
      %s301 = scalar_lea.vmem %s7, %s300
      %v303 = vld [vmem:[%s296] sm:$0x7]
      %v304 = vld [vmem:[%s1] sm:$0xff]
      %v305 = vld [vmem:[%s1 + $0x8] sm:$0xff]
      %v306 = vld [vmem:[%s1 + $0x10] sm:$0xff]
      %v307 = vld [vmem:[%s1 + $0x18] sm:$0xff]
      %v308 = vld [vmem:[%s1 + $0x20] sm:$0xff]
      %v309 = vld [vmem:[%s1 + $0x28] sm:$0xff]
      %v310 = vld [vmem:[%s1 + $0x30] sm:$0xff]
      %v311 = vld [vmem:[%s1 + $0x38] sm:$0xff]
      %313 = vset.pattern.permute.xlu0 0
      %314 = vperm.xlu0 %313, %v304
      %v315 = vpop.permute.xlu0 %314
      %318 = vset.pattern.permute.xlu0 0
      %319 = vperm.xlu0 %318, %v305
      %v320 = vpop.permute.xlu0 %319
      %323 = vset.pattern.permute.xlu0 0
      %324 = vperm.xlu0 %323, %v306
      %v325 = vpop.permute.xlu0 %324
      %328 = vset.pattern.permute.xlu0 0
      %329 = vperm.xlu0 %328, %v307
      %v330 = vpop.permute.xlu0 %329
      %333 = vset.pattern.permute.xlu0 0
      %334 = vperm.xlu0 %333, %v308
      %v335 = vpop.permute.xlu0 %334
      %338 = vset.pattern.permute.xlu0 0
      %339 = vperm.xlu0 %338, %v309
      %v340 = vpop.permute.xlu0 %339
      %343 = vset.pattern.permute.xlu0 0
      %344 = vperm.xlu0 %343, %v310
      %v345 = vpop.permute.xlu0 %344
      %348 = vset.pattern.permute.xlu0 0
      %349 = vperm.xlu0 %348, %v311
      %v350 = vpop.permute.xlu0 %349
      %v352 = vlaneseq
      %v353 = vshrl.u32 %v352, 7
      %v354 = vsub.s32 0, %v353
      %v355 = vrot.slane %v303, %v354
      %v356 = vmul.f32 %v315, %v355
      %v357 = vmul.f32 %v320, %v355
      %v358 = vmul.f32 %v325, %v355
      %v359 = vmul.f32 %v330, %v355
      %v360 = vmul.f32 %v335, %v355
      %v361 = vmul.f32 %v340, %v355
      %v362 = vmul.f32 %v345, %v355
      %v363 = vmul.f32 %v350, %v355
      %364 = vset.pattern.permute.xlu0 1
      %365 = vperm.xlu0 %364, %v304
      %v366 = vpop.permute.xlu0 %365
      %368 = vset.pattern.permute.xlu0 1
      %369 = vperm.xlu0 %368, %v305
      %v370 = vpop.permute.xlu0 %369
      %372 = vset.pattern.permute.xlu0 1
      %373 = vperm.xlu0 %372, %v306
      %v374 = vpop.permute.xlu0 %373
      %376 = vset.pattern.permute.xlu0 1
      %377 = vperm.xlu0 %376, %v307
      %v378 = vpop.permute.xlu0 %377
      %380 = vset.pattern.permute.xlu0 1
      %381 = vperm.xlu0 %380, %v308
      %v382 = vpop.permute.xlu0 %381
      %384 = vset.pattern.permute.xlu0 1
      %385 = vperm.xlu0 %384, %v309
      %v386 = vpop.permute.xlu0 %385
      %388 = vset.pattern.permute.xlu0 1
      %389 = vperm.xlu0 %388, %v310
      %v390 = vpop.permute.xlu0 %389
      %392 = vset.pattern.permute.xlu0 1
      %393 = vperm.xlu0 %392, %v311
      %v394 = vpop.permute.xlu0 %393
      %v396 = vlaneseq
      %v397 = vshrl.u32 %v396, 7
      %v398 = vsub.s32 1, %v397
      %v399 = vrot.slane %v303, %v398
      %v400 = vmul.f32 %v366, %v399
      %v401 = vmul.f32 %v370, %v399
      %v402 = vmul.f32 %v374, %v399
      %v403 = vmul.f32 %v378, %v399
      %v404 = vmul.f32 %v382, %v399
      %v405 = vmul.f32 %v386, %v399
      %v406 = vmul.f32 %v390, %v399
      %v407 = vmul.f32 %v394, %v399
      %v408 = vadd.f32 %v356, %v400
      %v409 = vadd.f32 %v357, %v401
      %v410 = vadd.f32 %v358, %v402
      %v411 = vadd.f32 %v359, %v403
      %v412 = vadd.f32 %v360, %v404
      %v413 = vadd.f32 %v361, %v405
      %v414 = vadd.f32 %v362, %v406
      %v415 = vadd.f32 %v363, %v407
      %416 = vset.pattern.permute.xlu0 2
      %417 = vperm.xlu0 %416, %v304
      %v418 = vpop.permute.xlu0 %417
      %420 = vset.pattern.permute.xlu0 2
      %421 = vperm.xlu0 %420, %v305
      %v422 = vpop.permute.xlu0 %421
      %424 = vset.pattern.permute.xlu0 2
      %425 = vperm.xlu0 %424, %v306
      %v426 = vpop.permute.xlu0 %425
      %428 = vset.pattern.permute.xlu0 2
      %429 = vperm.xlu0 %428, %v307
      %v430 = vpop.permute.xlu0 %429
      %432 = vset.pattern.permute.xlu0 2
      %433 = vperm.xlu0 %432, %v308
      %v434 = vpop.permute.xlu0 %433
      %436 = vset.pattern.permute.xlu0 2
      %437 = vperm.xlu0 %436, %v309
      %v438 = vpop.permute.xlu0 %437
      %440 = vset.pattern.permute.xlu0 2
      %441 = vperm.xlu0 %440, %v310
      %v442 = vpop.permute.xlu0 %441
      %444 = vset.pattern.permute.xlu0 2
      %445 = vperm.xlu0 %444, %v311
      %v446 = vpop.permute.xlu0 %445
      %v448 = vlaneseq
      %v449 = vshrl.u32 %v448, 7
      %v450 = vsub.s32 2, %v449
      %v451 = vrot.slane %v303, %v450
      %v452 = vmul.f32 %v418, %v451
      %v453 = vmul.f32 %v422, %v451
      %v454 = vmul.f32 %v426, %v451
      %v455 = vmul.f32 %v430, %v451
      %v456 = vmul.f32 %v434, %v451
      %v457 = vmul.f32 %v438, %v451
      %v458 = vmul.f32 %v442, %v451
      %v459 = vmul.f32 %v446, %v451
      %v460 = vadd.f32 %v408, %v452
      %v461 = vadd.f32 %v409, %v453
      %v462 = vadd.f32 %v410, %v454
      %v463 = vadd.f32 %v411, %v455
      %v464 = vadd.f32 %v412, %v456
      %v465 = vadd.f32 %v413, %v457
      %v466 = vadd.f32 %v414, %v458
      %v467 = vadd.f32 %v415, %v459
      %v468 = vld [vmem:[%s6] sm:$0xff]
      %v469 = vld [vmem:[%s6 + $0x8] sm:$0xff]
      %v470 = vld [vmem:[%s6 + $0x10] sm:$0xff]
      %v471 = vld [vmem:[%s6 + $0x18] sm:$0xff]
      %v472 = vld [vmem:[%s6 + $0x20] sm:$0xff]
      %v473 = vld [vmem:[%s6 + $0x28] sm:$0xff]
      %v474 = vld [vmem:[%s6 + $0x30] sm:$0xff]
      %v475 = vld [vmem:[%s6 + $0x38] sm:$0xff]
      %477 = vset.pattern.permute.xlu0 0
      %478 = vperm.xlu0 %477, %v468
      %v479 = vpop.permute.xlu0 %478
      %482 = vset.pattern.permute.xlu0 0
      %483 = vperm.xlu0 %482, %v469
      %v484 = vpop.permute.xlu0 %483
      %487 = vset.pattern.permute.xlu0 0
      %488 = vperm.xlu0 %487, %v470
      %v489 = vpop.permute.xlu0 %488
      %492 = vset.pattern.permute.xlu0 0
      %493 = vperm.xlu0 %492, %v471
      %v494 = vpop.permute.xlu0 %493
      %497 = vset.pattern.permute.xlu0 0
      %498 = vperm.xlu0 %497, %v472
      %v499 = vpop.permute.xlu0 %498
      %502 = vset.pattern.permute.xlu0 0
      %503 = vperm.xlu0 %502, %v473
      %v504 = vpop.permute.xlu0 %503
      %507 = vset.pattern.permute.xlu0 0
      %508 = vperm.xlu0 %507, %v474
      %v509 = vpop.permute.xlu0 %508
      %512 = vset.pattern.permute.xlu0 0
      %513 = vperm.xlu0 %512, %v475
      %v514 = vpop.permute.xlu0 %513
      %v516 = vadd.f32 %v460, %v479
      %v517 = vadd.f32 %v461, %v484
      %v518 = vadd.f32 %v462, %v489
      %v519 = vadd.f32 %v463, %v494
      %v520 = vadd.f32 %v464, %v499
      %v521 = vadd.f32 %v465, %v504
      %v522 = vadd.f32 %v466, %v509
      %v523 = vadd.f32 %v467, %v514
      %v524 = vmax.f32 %v516, 0.0
      %v525 = vmax.f32 %v517, 0.0
      %v526 = vmax.f32 %v518, 0.0
      %v527 = vmax.f32 %v519, 0.0
      %v528 = vmax.f32 %v520, 0.0
      %v529 = vmax.f32 %v521, 0.0
      %v530 = vmax.f32 %v522, 0.0
      %v531 = vmax.f32 %v523, 0.0
      %v532 = vld [vmem:[%s2] sm:$0xf]
      %v533 = vld [vmem:[%s2 + $0x4] sm:$0xf]
      %v534 = vld [vmem:[%s2 + $0x8] sm:$0xf]
      %v535 = vld [vmem:[%s2 + $0xc] sm:$0xf]
      %v536 = vld [vmem:[%s2 + $0x10] sm:$0xf]
      %v537 = vld [vmem:[%s2 + $0x14] sm:$0xf]
      %v538 = vld [vmem:[%s2 + $0x18] sm:$0xf]
      %v539 = vld [vmem:[%s2 + $0x1c] sm:$0xf]
      %v540 = vpack.c.bf16 %v525, %v524
      %v541 = vpack.c.bf16 %v527, %v526
      %v542 = vpack.c.bf16 %v529, %v528
      %v543 = vpack.c.bf16 %v531, %v530
      %v544 = vld [vmem:[%s6 + $0x40] sm:$0xff]
      %v545 = vld [vmem:[%s6 + $0x48] sm:$0xff]
      %v546 = vld [vmem:[%s6 + $0x50] sm:$0xff]
      %v547 = vld [vmem:[%s6 + $0x58] sm:$0xff]
      %v548 = vld [vmem:[%s6 + $0x60] sm:$0xff]
      %v549 = vld [vmem:[%s6 + $0x68] sm:$0xff]
      %v550 = vld [vmem:[%s6 + $0x70] sm:$0xff]
      %v551 = vld [vmem:[%s6 + $0x78] sm:$0xff]
      %553 = vset.pattern.permute.xlu0 0
      %554 = vperm.xlu0 %553, %v544
      %v555 = vpop.permute.xlu0 %554
      %558 = vset.pattern.permute.xlu0 0
      %559 = vperm.xlu0 %558, %v545
      %v560 = vpop.permute.xlu0 %559
      %563 = vset.pattern.permute.xlu0 0
      %564 = vperm.xlu0 %563, %v546
      %v565 = vpop.permute.xlu0 %564
      %568 = vset.pattern.permute.xlu0 0
      %569 = vperm.xlu0 %568, %v547
      %v570 = vpop.permute.xlu0 %569
      %573 = vset.pattern.permute.xlu0 0
      %574 = vperm.xlu0 %573, %v548
      %v575 = vpop.permute.xlu0 %574
      %578 = vset.pattern.permute.xlu0 0
      %579 = vperm.xlu0 %578, %v549
      %v580 = vpop.permute.xlu0 %579
      %583 = vset.pattern.permute.xlu0 0
      %584 = vperm.xlu0 %583, %v550
      %v585 = vpop.permute.xlu0 %584
      %588 = vset.pattern.permute.xlu0 0
      %589 = vperm.xlu0 %588, %v551
      %v590 = vpop.permute.xlu0 %589
      %v600 = vunpack.c.l.b16 %v532
      %v601 = vunpack.c.l.b16 %v533
      %v602 = vunpack.c.l.b16 %v534
      %v603 = vunpack.c.l.b16 %v535
      %v604 = vunpack.c.l.b16 %v536
      %v605 = vunpack.c.l.b16 %v537
      %v606 = vunpack.c.l.b16 %v538
      %v607 = vunpack.c.l.b16 %v539
      %v608 = vpack.c.b16 %v601, %v600
      %v609 = vpack.c.b16 %v603, %v602
      %v610 = vpack.c.b16 %v605, %v604
      %v611 = vpack.c.b16 %v607, %v606
      %vm612 = vcmask 523264
      %v614 = vsel %vm612, %v608, 0
      %v617 = vsel %vm612, %v609, 0
      %v620 = vsel %vm612, %v610, 0
      %v623 = vsel %vm612, %v611, 0
      %625 = vmatprep.subr.bf16.mxu0 0
      %626 = vmatpush1.bf16.msra.mxu0 %v540
      %627 = vmatprep.subr.bf16.mxu0 0
      %628 = vmatpush1.bf16.msra.mxu0 %v541
      %629 = vmatprep.subr.bf16.mxu0 0
      %630 = vmatpush1.bf16.msra.mxu0 %v542
      %631 = vmatprep.subr.bf16.mxu0 0
      %632 = vmatpush1.bf16.msra.mxu0 %v543
      %633 = vmatprep.subr.bf16.mxu0 0
      %634 = vmatpush1.bf16.msra.mxu0 0
      %635 = vmatprep.subr.bf16.mxu0 0
      %636 = vmatpush1.bf16.msra.mxu0 0
      %637 = vmatprep.subr.bf16.mxu0 0
      %638 = vmatpush1.bf16.msra.mxu0 0
      %639 = vmatprep.subr.bf16.mxu0 0
      %640 = vmatpush1.bf16.msra.mxu0 0
      %641 = vmatprep.subr.bf16.mxu0 0
      %642 = vmatpush1.bf16.msra.mxu0 0
      %643 = vmatprep.subr.bf16.mxu0 0
      %644 = vmatpush1.bf16.msra.mxu0 0
      %645 = vmatprep.subr.bf16.mxu0 0
      %646 = vmatpush1.bf16.msra.mxu0 0
      %647 = vmatprep.subr.bf16.mxu0 0
      %648 = vmatpush1.bf16.msra.mxu0 0
      %649 = vmatprep.subr.bf16.mxu0 0
      %650 = vmatpush1.bf16.msra.mxu0 0
      %651 = vmatprep.subr.bf16.mxu0 0
      %652 = vmatpush1.bf16.msra.mxu0 0
      %653 = vmatprep.subr.bf16.mxu0 0
      %654 = vmatpush1.bf16.msra.mxu0 0
      %655 = vmatprep.subr.bf16.mxu0 0
      %656 = vmatpush1.bf16.msra.mxu0 0
      %657 = vmatprep.mubr.bf16.mxu0 0
      %658 = vmatmul.mubr.bf16.gmra.mrb[0].mxu0 %v614
      %v659 = vpop.f32.mrb[0].mxu0
      %v660 = vadd.f32 %v555, %v659
      %v661 = vpop.f32.mrb[0].mxu0
      %v662 = vpop.f32.mrb[0].mxu0
      %v663 = vadd.f32 %v560, %v662
      %v664 = vpop.f32.mrb[0].mxu0
      %665 = vmatprep.mubr.bf16.mxu0 0
      %666 = vmatmul.mubr.bf16.gmra.mrb[0].mxu0 %v617
      %v667 = vpop.f32.mrb[0].mxu0
      %v668 = vadd.f32 %v565, %v667
      %v669 = vpop.f32.mrb[0].mxu0
      %v670 = vpop.f32.mrb[0].mxu0
      %v671 = vadd.f32 %v570, %v670
      %v672 = vpop.f32.mrb[0].mxu0
      %673 = vmatprep.mubr.bf16.mxu0 0
      %674 = vmatmul.mubr.bf16.gmra.mrb[0].mxu0 %v620
      %v675 = vpop.f32.mrb[0].mxu0
      %v676 = vadd.f32 %v575, %v675
      %v677 = vpop.f32.mrb[0].mxu0
      %v678 = vpop.f32.mrb[0].mxu0
      %v679 = vadd.f32 %v580, %v678
      %v680 = vpop.f32.mrb[0].mxu0
      %681 = vmatprep.mubr.bf16.mxu0 0
      %682 = vmatmul.mubr.bf16.gmra.mrb[0].mxu0 %v623
      %v683 = vpop.f32.mrb[0].mxu0
      %v684 = vadd.f32 %v585, %v683
      %v685 = vpop.f32.mrb[0].mxu0
      %v686 = vpop.f32.mrb[0].mxu0
      %v687 = vadd.f32 %v590, %v686
      %v688 = vpop.f32.mrb[0].mxu0
      %689 = vdwg.mxu0
      %v690 = vmax.f32 %v660, 0.0
      %v691 = vmax.f32 %v663, 0.0
      %v692 = vmax.f32 %v668, 0.0
      %v693 = vmax.f32 %v671, 0.0
      %v694 = vmax.f32 %v676, 0.0
      %v695 = vmax.f32 %v679, 0.0
      %v696 = vmax.f32 %v684, 0.0
      %v697 = vmax.f32 %v687, 0.0
      %v698 = vld [vmem:[%s3] sm:$0xf]
      %v699 = vld [vmem:[%s3 + $0x4] sm:$0xf]
      %v700 = vld [vmem:[%s3 + $0x8] sm:$0xf]
      %v701 = vld [vmem:[%s3 + $0xc] sm:$0xf]
      %v702 = vld [vmem:[%s3 + $0x10] sm:$0xf]
      %v703 = vld [vmem:[%s3 + $0x14] sm:$0xf]
      %v704 = vld [vmem:[%s3 + $0x18] sm:$0xf]
      %v705 = vld [vmem:[%s3 + $0x1c] sm:$0xf]
      %v706 = vpack.c.bf16 %v691, %v690
      %v707 = vpack.c.bf16 %v693, %v692
      %v708 = vpack.c.bf16 %v695, %v694
      %v709 = vpack.c.bf16 %v697, %v696
      %v710 = vld [vmem:[%s6 + $0x80] sm:$0xff]
      %v711 = vld [vmem:[%s6 + $0x88] sm:$0xff]
      %v712 = vld [vmem:[%s6 + $0x90] sm:$0xff]
      %v713 = vld [vmem:[%s6 + $0x98] sm:$0xff]
      %v714 = vld [vmem:[%s6 + $0xa0] sm:$0xff]
      %v715 = vld [vmem:[%s6 + $0xa8] sm:$0xff]
      %v716 = vld [vmem:[%s6 + $0xb0] sm:$0xff]
      %v717 = vld [vmem:[%s6 + $0xb8] sm:$0xff]
      %719 = vset.pattern.permute.xlu0 0
      %720 = vperm.xlu0 %719, %v710
      %v721 = vpop.permute.xlu0 %720
      %724 = vset.pattern.permute.xlu0 0
      %725 = vperm.xlu0 %724, %v711
      %v726 = vpop.permute.xlu0 %725
      %729 = vset.pattern.permute.xlu0 0
      %730 = vperm.xlu0 %729, %v712
      %v731 = vpop.permute.xlu0 %730
      %734 = vset.pattern.permute.xlu0 0
      %735 = vperm.xlu0 %734, %v713
      %v736 = vpop.permute.xlu0 %735
      %739 = vset.pattern.permute.xlu0 0
      %740 = vperm.xlu0 %739, %v714
      %v741 = vpop.permute.xlu0 %740
      %744 = vset.pattern.permute.xlu0 0
      %745 = vperm.xlu0 %744, %v715
      %v746 = vpop.permute.xlu0 %745
      %749 = vset.pattern.permute.xlu0 0
      %750 = vperm.xlu0 %749, %v716
      %v751 = vpop.permute.xlu0 %750
      %754 = vset.pattern.permute.xlu0 0
      %755 = vperm.xlu0 %754, %v717
      %v756 = vpop.permute.xlu0 %755
      %v766 = vunpack.c.l.b16 %v698
      %v767 = vunpack.c.l.b16 %v699
      %v768 = vunpack.c.l.b16 %v700
      %v769 = vunpack.c.l.b16 %v701
      %v770 = vunpack.c.l.b16 %v702
      %v771 = vunpack.c.l.b16 %v703
      %v772 = vunpack.c.l.b16 %v704
      %v773 = vunpack.c.l.b16 %v705
      %v774 = vpack.c.b16 %v767, %v766
      %v775 = vpack.c.b16 %v769, %v768
      %v776 = vpack.c.b16 %v771, %v770
      %v777 = vpack.c.b16 %v773, %v772
      %v779 = vsel %vm612, %v774, 0
      %v782 = vsel %vm612, %v775, 0
      %v785 = vsel %vm612, %v776, 0
      %v788 = vsel %vm612, %v777, 0
      %790 = vmatprep.subr.bf16.mxu0 0
      %791 = vmatpush1.bf16.msra.mxu0 %v706
      %792 = vmatprep.subr.bf16.mxu0 0
      %793 = vmatpush1.bf16.msra.mxu0 %v707
      %794 = vmatprep.subr.bf16.mxu0 0
      %795 = vmatpush1.bf16.msra.mxu0 %v708
      %796 = vmatprep.subr.bf16.mxu0 0
      %797 = vmatpush1.bf16.msra.mxu0 %v709
      %798 = vmatprep.subr.bf16.mxu0 0
      %799 = vmatpush1.bf16.msra.mxu0 0
      %800 = vmatprep.subr.bf16.mxu0 0
      %801 = vmatpush1.bf16.msra.mxu0 0
      %802 = vmatprep.subr.bf16.mxu0 0
      %803 = vmatpush1.bf16.msra.mxu0 0
      %804 = vmatprep.subr.bf16.mxu0 0
      %805 = vmatpush1.bf16.msra.mxu0 0
      %806 = vmatprep.subr.bf16.mxu0 0
      %807 = vmatpush1.bf16.msra.mxu0 0
      %808 = vmatprep.subr.bf16.mxu0 0
      %809 = vmatpush1.bf16.msra.mxu0 0
      %810 = vmatprep.subr.bf16.mxu0 0
      %811 = vmatpush1.bf16.msra.mxu0 0
      %812 = vmatprep.subr.bf16.mxu0 0
      %813 = vmatpush1.bf16.msra.mxu0 0
      %814 = vmatprep.subr.bf16.mxu0 0
      %815 = vmatpush1.bf16.msra.mxu0 0
      %816 = vmatprep.subr.bf16.mxu0 0
      %817 = vmatpush1.bf16.msra.mxu0 0
      %818 = vmatprep.subr.bf16.mxu0 0
      %819 = vmatpush1.bf16.msra.mxu0 0
      %820 = vmatprep.subr.bf16.mxu0 0
      %821 = vmatpush1.bf16.msra.mxu0 0
      %822 = vmatprep.mubr.bf16.mxu0 0
      %823 = vmatmul.mubr.bf16.gmra.mrb[0].mxu0 %v779
      %v824 = vpop.f32.mrb[0].mxu0
      %v825 = vadd.f32 %v721, %v824
      %v826 = vpop.f32.mrb[0].mxu0
      %v827 = vpop.f32.mrb[0].mxu0
      %v828 = vadd.f32 %v726, %v827
      %v829 = vpop.f32.mrb[0].mxu0
      %830 = vmatprep.mubr.bf16.mxu0 0
      %831 = vmatmul.mubr.bf16.gmra.mrb[0].mxu0 %v782
      %v832 = vpop.f32.mrb[0].mxu0
      %v833 = vadd.f32 %v731, %v832
      %v834 = vpop.f32.mrb[0].mxu0
      %v835 = vpop.f32.mrb[0].mxu0
      %v836 = vadd.f32 %v736, %v835
      %v837 = vpop.f32.mrb[0].mxu0
      %838 = vmatprep.mubr.bf16.mxu0 0
      %839 = vmatmul.mubr.bf16.gmra.mrb[0].mxu0 %v785
      %v840 = vpop.f32.mrb[0].mxu0
      %v841 = vadd.f32 %v741, %v840
      %v842 = vpop.f32.mrb[0].mxu0
      %v843 = vpop.f32.mrb[0].mxu0
      %v844 = vadd.f32 %v746, %v843
      %v845 = vpop.f32.mrb[0].mxu0
      %846 = vmatprep.mubr.bf16.mxu0 0
      %847 = vmatmul.mubr.bf16.gmra.mrb[0].mxu0 %v788
      %v848 = vpop.f32.mrb[0].mxu0
      %v849 = vadd.f32 %v751, %v848
      %v850 = vpop.f32.mrb[0].mxu0
      %v851 = vpop.f32.mrb[0].mxu0
      %v852 = vadd.f32 %v756, %v851
      %v853 = vpop.f32.mrb[0].mxu0
      %854 = vdwg.mxu0
      %v855 = vmax.f32 %v825, 0.0
      %v856 = vmax.f32 %v828, 0.0
      %v857 = vmax.f32 %v833, 0.0
      %v858 = vmax.f32 %v836, 0.0
      %v859 = vmax.f32 %v841, 0.0
      %v860 = vmax.f32 %v844, 0.0
      %v861 = vmax.f32 %v849, 0.0
      %v862 = vmax.f32 %v852, 0.0
      %v863 = vld [vmem:[%s4] sm:$0xf]
      %v864 = vld [vmem:[%s4 + $0x4] sm:$0xf]
      %v865 = vld [vmem:[%s4 + $0x8] sm:$0xf]
      %v866 = vld [vmem:[%s4 + $0xc] sm:$0xf]
      %v867 = vld [vmem:[%s4 + $0x10] sm:$0xf]
      %v868 = vld [vmem:[%s4 + $0x14] sm:$0xf]
      %v869 = vld [vmem:[%s4 + $0x18] sm:$0xf]
      %v870 = vld [vmem:[%s4 + $0x1c] sm:$0xf]
      %v871 = vld [vmem:[%s4 + $0x20] sm:$0xf]
      %v872 = vld [vmem:[%s4 + $0x24] sm:$0xf]
      %v873 = vld [vmem:[%s4 + $0x28] sm:$0xf]
      %v874 = vld [vmem:[%s4 + $0x2c] sm:$0xf]
      %v875 = vld [vmem:[%s4 + $0x30] sm:$0xf]
      %v876 = vld [vmem:[%s4 + $0x34] sm:$0xf]
      %v877 = vld [vmem:[%s4 + $0x38] sm:$0xf]
      %v878 = vld [vmem:[%s4 + $0x3c] sm:$0xf]
      %v879 = vpack.c.bf16 %v856, %v855
      %v880 = vpack.c.bf16 %v858, %v857
      %v881 = vpack.c.bf16 %v860, %v859
      %v882 = vpack.c.bf16 %v862, %v861
      %v883 = vld [vmem:[%s6 + $0xc0] sm:$0xff]
      %v884 = vld [vmem:[%s6 + $0xc8] sm:$0xff]
      %v885 = vld [vmem:[%s6 + $0xd0] sm:$0xff]
      %v886 = vld [vmem:[%s6 + $0xd8] sm:$0xff]
      %v887 = vld [vmem:[%s6 + $0xe0] sm:$0xff]
      %v888 = vld [vmem:[%s6 + $0xe8] sm:$0xff]
      %v889 = vld [vmem:[%s6 + $0xf0] sm:$0xff]
      %v890 = vld [vmem:[%s6 + $0xf8] sm:$0xff]
      %v891 = vld [vmem:[%s6 + $0x100] sm:$0xff]
      %v892 = vld [vmem:[%s6 + $0x108] sm:$0xff]
      %v893 = vld [vmem:[%s6 + $0x110] sm:$0xff]
      %v894 = vld [vmem:[%s6 + $0x118] sm:$0xff]
      %v895 = vld [vmem:[%s6 + $0x120] sm:$0xff]
      %v896 = vld [vmem:[%s6 + $0x128] sm:$0xff]
      %v897 = vld [vmem:[%s6 + $0x130] sm:$0xff]
      %v898 = vld [vmem:[%s6 + $0x138] sm:$0xff]
      %900 = vset.pattern.permute.xlu0 0
      %901 = vperm.xlu0 %900, %v883
      %v902 = vpop.permute.xlu0 %901
      %905 = vset.pattern.permute.xlu0 0
      %906 = vperm.xlu0 %905, %v884
      %v907 = vpop.permute.xlu0 %906
      %910 = vset.pattern.permute.xlu0 0
      %911 = vperm.xlu0 %910, %v885
      %v912 = vpop.permute.xlu0 %911
      %915 = vset.pattern.permute.xlu0 0
      %916 = vperm.xlu0 %915, %v886
      %v917 = vpop.permute.xlu0 %916
      %920 = vset.pattern.permute.xlu0 0
      %921 = vperm.xlu0 %920, %v887
      %v922 = vpop.permute.xlu0 %921
      %925 = vset.pattern.permute.xlu0 0
      %926 = vperm.xlu0 %925, %v888
      %v927 = vpop.permute.xlu0 %926
      %930 = vset.pattern.permute.xlu0 0
      %931 = vperm.xlu0 %930, %v889
      %v932 = vpop.permute.xlu0 %931
      %935 = vset.pattern.permute.xlu0 0
      %936 = vperm.xlu0 %935, %v890
      %v937 = vpop.permute.xlu0 %936
      %940 = vset.pattern.permute.xlu0 0
      %941 = vperm.xlu0 %940, %v891
      %v942 = vpop.permute.xlu0 %941
      %945 = vset.pattern.permute.xlu0 0
      %946 = vperm.xlu0 %945, %v892
      %v947 = vpop.permute.xlu0 %946
      %950 = vset.pattern.permute.xlu0 0
      %951 = vperm.xlu0 %950, %v893
      %v952 = vpop.permute.xlu0 %951
      %955 = vset.pattern.permute.xlu0 0
      %956 = vperm.xlu0 %955, %v894
      %v957 = vpop.permute.xlu0 %956
      %960 = vset.pattern.permute.xlu0 0
      %961 = vperm.xlu0 %960, %v895
      %v962 = vpop.permute.xlu0 %961
      %965 = vset.pattern.permute.xlu0 0
      %966 = vperm.xlu0 %965, %v896
      %v967 = vpop.permute.xlu0 %966
      %970 = vset.pattern.permute.xlu0 0
      %971 = vperm.xlu0 %970, %v897
      %v972 = vpop.permute.xlu0 %971
      %975 = vset.pattern.permute.xlu0 0
      %976 = vperm.xlu0 %975, %v898
      %v977 = vpop.permute.xlu0 %976
      %v995 = vunpack.c.l.b16 %v863
      %v996 = vunpack.c.l.b16 %v864
      %v997 = vunpack.c.l.b16 %v865
      %v998 = vunpack.c.l.b16 %v866
      %v999 = vunpack.c.l.b16 %v867
      %v1000 = vunpack.c.l.b16 %v868
      %v1001 = vunpack.c.l.b16 %v869
      %v1002 = vunpack.c.l.b16 %v870
      %v1003 = vunpack.c.l.b16 %v871
      %v1004 = vunpack.c.l.b16 %v872
      %v1005 = vunpack.c.l.b16 %v873
      %v1006 = vunpack.c.l.b16 %v874
      %v1007 = vunpack.c.l.b16 %v875
      %v1008 = vunpack.c.l.b16 %v876
      %v1009 = vunpack.c.l.b16 %v877
      %v1010 = vunpack.c.l.b16 %v878
      %v1011 = vpack.c.b16 %v996, %v995
      %v1012 = vpack.c.b16 %v998, %v997
      %v1013 = vpack.c.b16 %v1000, %v999
      %v1014 = vpack.c.b16 %v1002, %v1001
      %v1015 = vpack.c.b16 %v1004, %v1003
      %v1016 = vpack.c.b16 %v1006, %v1005
      %v1017 = vpack.c.b16 %v1008, %v1007
      %v1018 = vpack.c.b16 %v1010, %v1009
      %v1020 = vsel %vm612, %v1011, 0
      %v1023 = vsel %vm612, %v1012, 0
      %v1026 = vsel %vm612, %v1013, 0
      %v1029 = vsel %vm612, %v1014, 0
      %v1032 = vsel %vm612, %v1015, 0
      %v1035 = vsel %vm612, %v1016, 0
      %v1038 = vsel %vm612, %v1017, 0
      %v1041 = vsel %vm612, %v1018, 0
      %1043 = vmatprep.subr.bf16.mxu0 0
      %1044 = vmatpush1.bf16.msra.mxu0 %v879
      %1045 = vmatprep.subr.bf16.mxu0 0
      %1046 = vmatpush1.bf16.msra.mxu0 %v880
      %1047 = vmatprep.subr.bf16.mxu0 0
      %1048 = vmatpush1.bf16.msra.mxu0 %v881
      %1049 = vmatprep.subr.bf16.mxu0 0
      %1050 = vmatpush1.bf16.msra.mxu0 %v882
      %1051 = vmatprep.subr.bf16.mxu0 0
      %1052 = vmatpush1.bf16.msra.mxu0 0
      %1053 = vmatprep.subr.bf16.mxu0 0
      %1054 = vmatpush1.bf16.msra.mxu0 0
      %1055 = vmatprep.subr.bf16.mxu0 0
      %1056 = vmatpush1.bf16.msra.mxu0 0
      %1057 = vmatprep.subr.bf16.mxu0 0
      %1058 = vmatpush1.bf16.msra.mxu0 0
      %1059 = vmatprep.subr.bf16.mxu0 0
      %1060 = vmatpush1.bf16.msra.mxu0 0
      %1061 = vmatprep.subr.bf16.mxu0 0
      %1062 = vmatpush1.bf16.msra.mxu0 0
      %1063 = vmatprep.subr.bf16.mxu0 0
      %1064 = vmatpush1.bf16.msra.mxu0 0
      %1065 = vmatprep.subr.bf16.mxu0 0
      %1066 = vmatpush1.bf16.msra.mxu0 0
      %1067 = vmatprep.subr.bf16.mxu0 0
      %1068 = vmatpush1.bf16.msra.mxu0 0
      %1069 = vmatprep.subr.bf16.mxu0 0
      %1070 = vmatpush1.bf16.msra.mxu0 0
      %1071 = vmatprep.subr.bf16.mxu0 0
      %1072 = vmatpush1.bf16.msra.mxu0 0
      %1073 = vmatprep.subr.bf16.mxu0 0
      %1074 = vmatpush1.bf16.msra.mxu0 0
      %1075 = vmatprep.mubr.bf16.mxu0 0
      %1076 = vmatmul.mubr.bf16.gmra.mrb[0].mxu0 %v1020
      %v1077 = vpop.f32.mrb[0].mxu0
      %v1078 = vadd.f32 %v902, %v1077
      %v1079 = vpop.f32.mrb[0].mxu0
      %v1080 = vpop.f32.mrb[0].mxu0
      %v1081 = vadd.f32 %v907, %v1080
      %v1082 = vpop.f32.mrb[0].mxu0
      %1083 = vmatprep.mubr.bf16.mxu0 0
      %1084 = vmatmul.mubr.bf16.gmra.mrb[0].mxu0 %v1023
      %v1085 = vpop.f32.mrb[0].mxu0
      %v1086 = vadd.f32 %v912, %v1085
      %v1087 = vpop.f32.mrb[0].mxu0
      %v1088 = vpop.f32.mrb[0].mxu0
      %v1089 = vadd.f32 %v917, %v1088
      %v1090 = vpop.f32.mrb[0].mxu0
      %1091 = vmatprep.mubr.bf16.mxu0 0
      %1092 = vmatmul.mubr.bf16.gmra.mrb[0].mxu0 %v1026
      %v1093 = vpop.f32.mrb[0].mxu0
      %v1094 = vadd.f32 %v922, %v1093
      %v1095 = vpop.f32.mrb[0].mxu0
      %v1096 = vpop.f32.mrb[0].mxu0
      %v1097 = vadd.f32 %v927, %v1096
      %v1098 = vpop.f32.mrb[0].mxu0
      %1099 = vmatprep.mubr.bf16.mxu0 0
      %1100 = vmatmul.mubr.bf16.gmra.mrb[0].mxu0 %v1029
      %v1101 = vpop.f32.mrb[0].mxu0
      %v1102 = vadd.f32 %v932, %v1101
      %v1103 = vpop.f32.mrb[0].mxu0
      %v1104 = vpop.f32.mrb[0].mxu0
      %v1105 = vadd.f32 %v937, %v1104
      %v1106 = vpop.f32.mrb[0].mxu0
      %1107 = vmatprep.mubr.bf16.mxu0 0
      %1108 = vmatmul.mubr.bf16.gmra.mrb[0].mxu0 %v1032
      %v1109 = vpop.f32.mrb[0].mxu0
      %v1110 = vadd.f32 %v942, %v1109
      %v1111 = vpop.f32.mrb[0].mxu0
      %v1112 = vpop.f32.mrb[0].mxu0
      %v1113 = vadd.f32 %v947, %v1112
      %v1114 = vpop.f32.mrb[0].mxu0
      %1115 = vmatprep.mubr.bf16.mxu0 0
      %1116 = vmatmul.mubr.bf16.gmra.mrb[0].mxu0 %v1035
      %v1117 = vpop.f32.mrb[0].mxu0
      %v1118 = vadd.f32 %v952, %v1117
      %v1119 = vpop.f32.mrb[0].mxu0
      %v1120 = vpop.f32.mrb[0].mxu0
      %v1121 = vadd.f32 %v957, %v1120
      %v1122 = vpop.f32.mrb[0].mxu0
      %1123 = vmatprep.mubr.bf16.mxu0 0
      %1124 = vmatmul.mubr.bf16.gmra.mrb[0].mxu0 %v1038
      %v1125 = vpop.f32.mrb[0].mxu0
      %v1126 = vadd.f32 %v962, %v1125
      %v1127 = vpop.f32.mrb[0].mxu0
      %v1128 = vpop.f32.mrb[0].mxu0
      %v1129 = vadd.f32 %v967, %v1128
      %v1130 = vpop.f32.mrb[0].mxu0
      %1131 = vmatprep.mubr.bf16.mxu0 0
      %1132 = vmatmul.mubr.bf16.gmra.mrb[0].mxu0 %v1041
      %v1133 = vpop.f32.mrb[0].mxu0
      %v1134 = vadd.f32 %v972, %v1133
      %v1135 = vpop.f32.mrb[0].mxu0
      %v1136 = vpop.f32.mrb[0].mxu0
      %v1137 = vadd.f32 %v977, %v1136
      %v1138 = vpop.f32.mrb[0].mxu0
      %1139 = vdwg.mxu0
      %v1140 = vmax.f32 %v1078, 0.0
      %v1141 = vmax.f32 %v1081, 0.0
      %v1142 = vmax.f32 %v1086, 0.0
      %v1143 = vmax.f32 %v1089, 0.0
      %v1144 = vmax.f32 %v1094, 0.0
      %v1145 = vmax.f32 %v1097, 0.0
      %v1146 = vmax.f32 %v1102, 0.0
      %v1147 = vmax.f32 %v1105, 0.0
      %v1148 = vmax.f32 %v1110, 0.0
      %v1149 = vmax.f32 %v1113, 0.0
      %v1150 = vmax.f32 %v1118, 0.0
      %v1151 = vmax.f32 %v1121, 0.0
      %v1152 = vmax.f32 %v1126, 0.0
      %v1153 = vmax.f32 %v1129, 0.0
      %v1154 = vmax.f32 %v1134, 0.0
      %v1155 = vmax.f32 %v1137, 0.0
      %v1156 = vld [vmem:[%s5] sm:$0xf]
      %v1157 = vld [vmem:[%s5 + $0x4] sm:$0xf]
      %v1158 = vld [vmem:[%s5 + $0x8] sm:$0xf]
      %v1159 = vld [vmem:[%s5 + $0xc] sm:$0xf]
      %v1160 = vld [vmem:[%s5 + $0x10] sm:$0xf]
      %v1161 = vld [vmem:[%s5 + $0x14] sm:$0xf]
      %v1162 = vld [vmem:[%s5 + $0x18] sm:$0xf]
      %v1163 = vld [vmem:[%s5 + $0x1c] sm:$0xf]
      %v1164 = vld [vmem:[%s5 + $0x20] sm:$0xf]
      %v1165 = vld [vmem:[%s5 + $0x24] sm:$0xf]
      %v1166 = vld [vmem:[%s5 + $0x28] sm:$0xf]
      %v1167 = vld [vmem:[%s5 + $0x2c] sm:$0xf]
      %v1168 = vld [vmem:[%s5 + $0x30] sm:$0xf]
      %v1169 = vld [vmem:[%s5 + $0x34] sm:$0xf]
      %v1170 = vld [vmem:[%s5 + $0x38] sm:$0xf]
      %v1171 = vld [vmem:[%s5 + $0x3c] sm:$0xf]
      %v1172 = vld [vmem:[%s5 + $0x40] sm:$0xf]
      %v1173 = vld [vmem:[%s5 + $0x44] sm:$0xf]
      %v1174 = vld [vmem:[%s5 + $0x48] sm:$0xf]
      %v1175 = vld [vmem:[%s5 + $0x4c] sm:$0xf]
      %v1176 = vld [vmem:[%s5 + $0x50] sm:$0xf]
      %v1177 = vld [vmem:[%s5 + $0x54] sm:$0xf]
      %v1178 = vld [vmem:[%s5 + $0x58] sm:$0xf]
      %v1179 = vld [vmem:[%s5 + $0x5c] sm:$0xf]
      %v1180 = vld [vmem:[%s5 + $0x60] sm:$0xf]
      %v1181 = vld [vmem:[%s5 + $0x64] sm:$0xf]
      %v1182 = vld [vmem:[%s5 + $0x68] sm:$0xf]
      %v1183 = vld [vmem:[%s5 + $0x6c] sm:$0xf]
      %v1184 = vld [vmem:[%s5 + $0x70] sm:$0xf]
      %v1185 = vld [vmem:[%s5 + $0x74] sm:$0xf]
      %v1186 = vld [vmem:[%s5 + $0x78] sm:$0xf]
      %v1187 = vld [vmem:[%s5 + $0x7c] sm:$0xf]
      %v1188 = vpack.c.bf16 %v1141, %v1140
      %v1189 = vpack.c.bf16 %v1143, %v1142
      %v1190 = vpack.c.bf16 %v1145, %v1144
      %v1191 = vpack.c.bf16 %v1147, %v1146
      %v1192 = vpack.c.bf16 %v1149, %v1148
      %v1193 = vpack.c.bf16 %v1151, %v1150
      %v1194 = vpack.c.bf16 %v1153, %v1152
      %v1195 = vpack.c.bf16 %v1155, %v1154
      %v1196 = vld [vmem:[%s6 + $0x140] sm:$0xff]
      %v1197 = vld [vmem:[%s6 + $0x148] sm:$0xff]
      %v1198 = vld [vmem:[%s6 + $0x150] sm:$0xff]
      %v1199 = vld [vmem:[%s6 + $0x158] sm:$0xff]
      %v1200 = vld [vmem:[%s6 + $0x160] sm:$0xff]
      %v1201 = vld [vmem:[%s6 + $0x168] sm:$0xff]
      %v1202 = vld [vmem:[%s6 + $0x170] sm:$0xff]
      %v1203 = vld [vmem:[%s6 + $0x178] sm:$0xff]
      %v1204 = vld [vmem:[%s6 + $0x180] sm:$0xff]
      %v1205 = vld [vmem:[%s6 + $0x188] sm:$0xff]
      %v1206 = vld [vmem:[%s6 + $0x190] sm:$0xff]
      %v1207 = vld [vmem:[%s6 + $0x198] sm:$0xff]
      %v1208 = vld [vmem:[%s6 + $0x1a0] sm:$0xff]
      %v1209 = vld [vmem:[%s6 + $0x1a8] sm:$0xff]
      %v1210 = vld [vmem:[%s6 + $0x1b0] sm:$0xff]
      %v1211 = vld [vmem:[%s6 + $0x1b8] sm:$0xff]
      %v1212 = vld [vmem:[%s6 + $0x1c0] sm:$0xff]
      %v1213 = vld [vmem:[%s6 + $0x1c8] sm:$0xff]
      %v1214 = vld [vmem:[%s6 + $0x1d0] sm:$0xff]
      %v1215 = vld [vmem:[%s6 + $0x1d8] sm:$0xff]
      %v1216 = vld [vmem:[%s6 + $0x1e0] sm:$0xff]
      %v1217 = vld [vmem:[%s6 + $0x1e8] sm:$0xff]
      %v1218 = vld [vmem:[%s6 + $0x1f0] sm:$0xff]
      %v1219 = vld [vmem:[%s6 + $0x1f8] sm:$0xff]
      %v1220 = vld [vmem:[%s6 + $0x200] sm:$0xff]
      %v1221 = vld [vmem:[%s6 + $0x208] sm:$0xff]
      %v1222 = vld [vmem:[%s6 + $0x210] sm:$0xff]
      %v1223 = vld [vmem:[%s6 + $0x218] sm:$0xff]
      %v1224 = vld [vmem:[%s6 + $0x220] sm:$0xff]
      %v1225 = vld [vmem:[%s6 + $0x228] sm:$0xff]
      %v1226 = vld [vmem:[%s6 + $0x230] sm:$0xff]
      %v1227 = vld [vmem:[%s6 + $0x238] sm:$0xff]
      %1229 = vset.pattern.permute.xlu0 0
      %1230 = vperm.xlu0 %1229, %v1196
      %v1231 = vpop.permute.xlu0 %1230
      %1234 = vset.pattern.permute.xlu0 0
      %1235 = vperm.xlu0 %1234, %v1197
      %v1236 = vpop.permute.xlu0 %1235
      %1239 = vset.pattern.permute.xlu0 0
      %1240 = vperm.xlu0 %1239, %v1198
      %v1241 = vpop.permute.xlu0 %1240
      %1244 = vset.pattern.permute.xlu0 0
      %1245 = vperm.xlu0 %1244, %v1199
      %v1246 = vpop.permute.xlu0 %1245
      %1249 = vset.pattern.permute.xlu0 0
      %1250 = vperm.xlu0 %1249, %v1200
      %v1251 = vpop.permute.xlu0 %1250
      %1254 = vset.pattern.permute.xlu0 0
      %1255 = vperm.xlu0 %1254, %v1201
      %v1256 = vpop.permute.xlu0 %1255
      %1259 = vset.pattern.permute.xlu0 0
      %1260 = vperm.xlu0 %1259, %v1202
      %v1261 = vpop.permute.xlu0 %1260
      %1264 = vset.pattern.permute.xlu0 0
      %1265 = vperm.xlu0 %1264, %v1203
      %v1266 = vpop.permute.xlu0 %1265
      %1269 = vset.pattern.permute.xlu0 0
      %1270 = vperm.xlu0 %1269, %v1204
      %v1271 = vpop.permute.xlu0 %1270
      %1274 = vset.pattern.permute.xlu0 0
      %1275 = vperm.xlu0 %1274, %v1205
      %v1276 = vpop.permute.xlu0 %1275
      %1279 = vset.pattern.permute.xlu0 0
      %1280 = vperm.xlu0 %1279, %v1206
      %v1281 = vpop.permute.xlu0 %1280
      %1284 = vset.pattern.permute.xlu0 0
      %1285 = vperm.xlu0 %1284, %v1207
      %v1286 = vpop.permute.xlu0 %1285
      %1289 = vset.pattern.permute.xlu0 0
      %1290 = vperm.xlu0 %1289, %v1208
      %v1291 = vpop.permute.xlu0 %1290
      %1294 = vset.pattern.permute.xlu0 0
      %1295 = vperm.xlu0 %1294, %v1209
      %v1296 = vpop.permute.xlu0 %1295
      %1299 = vset.pattern.permute.xlu0 0
      %1300 = vperm.xlu0 %1299, %v1210
      %v1301 = vpop.permute.xlu0 %1300
      %1304 = vset.pattern.permute.xlu0 0
      %1305 = vperm.xlu0 %1304, %v1211
      %v1306 = vpop.permute.xlu0 %1305
      %1309 = vset.pattern.permute.xlu0 0
      %1310 = vperm.xlu0 %1309, %v1212
      %v1311 = vpop.permute.xlu0 %1310
      %1314 = vset.pattern.permute.xlu0 0
      %1315 = vperm.xlu0 %1314, %v1213
      %v1316 = vpop.permute.xlu0 %1315
      %1319 = vset.pattern.permute.xlu0 0
      %1320 = vperm.xlu0 %1319, %v1214
      %v1321 = vpop.permute.xlu0 %1320
      %1324 = vset.pattern.permute.xlu0 0
      %1325 = vperm.xlu0 %1324, %v1215
      %v1326 = vpop.permute.xlu0 %1325
      %1329 = vset.pattern.permute.xlu0 0
      %1330 = vperm.xlu0 %1329, %v1216
      %v1331 = vpop.permute.xlu0 %1330
      %1334 = vset.pattern.permute.xlu0 0
      %1335 = vperm.xlu0 %1334, %v1217
      %v1336 = vpop.permute.xlu0 %1335
      %1339 = vset.pattern.permute.xlu0 0
      %1340 = vperm.xlu0 %1339, %v1218
      %v1341 = vpop.permute.xlu0 %1340
      %1344 = vset.pattern.permute.xlu0 0
      %1345 = vperm.xlu0 %1344, %v1219
      %v1346 = vpop.permute.xlu0 %1345
      %1349 = vset.pattern.permute.xlu0 0
      %1350 = vperm.xlu0 %1349, %v1220
      %v1351 = vpop.permute.xlu0 %1350
      %1354 = vset.pattern.permute.xlu0 0
      %1355 = vperm.xlu0 %1354, %v1221
      %v1356 = vpop.permute.xlu0 %1355
      %1359 = vset.pattern.permute.xlu0 0
      %1360 = vperm.xlu0 %1359, %v1222
      %v1361 = vpop.permute.xlu0 %1360
      %1364 = vset.pattern.permute.xlu0 0
      %1365 = vperm.xlu0 %1364, %v1223
      %v1366 = vpop.permute.xlu0 %1365
      %1369 = vset.pattern.permute.xlu0 0
      %1370 = vperm.xlu0 %1369, %v1224
      %v1371 = vpop.permute.xlu0 %1370
      %1374 = vset.pattern.permute.xlu0 0
      %1375 = vperm.xlu0 %1374, %v1225
      %v1376 = vpop.permute.xlu0 %1375
      %1379 = vset.pattern.permute.xlu0 0
      %1380 = vperm.xlu0 %1379, %v1226
      %v1381 = vpop.permute.xlu0 %1380
      %1384 = vset.pattern.permute.xlu0 0
      %1385 = vperm.xlu0 %1384, %v1227
      %v1386 = vpop.permute.xlu0 %1385
      %v1420 = vunpack.c.l.b16 %v1156
      %v1421 = vunpack.c.l.b16 %v1157
      %v1422 = vunpack.c.l.b16 %v1158
      %v1423 = vunpack.c.l.b16 %v1159
      %v1424 = vunpack.c.l.b16 %v1160
      %v1425 = vunpack.c.l.b16 %v1161
      %v1426 = vunpack.c.l.b16 %v1162
      %v1427 = vunpack.c.l.b16 %v1163
      %v1428 = vunpack.c.l.b16 %v1164
      %v1429 = vunpack.c.l.b16 %v1165
      %v1430 = vunpack.c.l.b16 %v1166
      %v1431 = vunpack.c.l.b16 %v1167
      %v1432 = vunpack.c.l.b16 %v1168
      %v1433 = vunpack.c.l.b16 %v1169
      %v1434 = vunpack.c.l.b16 %v1170
      %v1435 = vunpack.c.l.b16 %v1171
      %v1436 = vunpack.c.l.b16 %v1172
      %v1437 = vunpack.c.l.b16 %v1173
      %v1438 = vunpack.c.l.b16 %v1174
      %v1439 = vunpack.c.l.b16 %v1175
      %v1440 = vunpack.c.l.b16 %v1176
      %v1441 = vunpack.c.l.b16 %v1177
      %v1442 = vunpack.c.l.b16 %v1178
      %v1443 = vunpack.c.l.b16 %v1179
      %v1444 = vunpack.c.l.b16 %v1180
      %v1445 = vunpack.c.l.b16 %v1181
      %v1446 = vunpack.c.l.b16 %v1182
      %v1447 = vunpack.c.l.b16 %v1183
      %v1448 = vunpack.c.l.b16 %v1184
      %v1449 = vunpack.c.l.b16 %v1185
      %v1450 = vunpack.c.l.b16 %v1186
      %v1451 = vunpack.c.l.b16 %v1187
      %v1452 = vpack.c.b16 %v1421, %v1420
      %v1453 = vpack.c.b16 %v1423, %v1422
      %v1454 = vpack.c.b16 %v1425, %v1424
      %v1455 = vpack.c.b16 %v1427, %v1426
      %v1456 = vpack.c.b16 %v1429, %v1428
      %v1457 = vpack.c.b16 %v1431, %v1430
      %v1458 = vpack.c.b16 %v1433, %v1432
      %v1459 = vpack.c.b16 %v1435, %v1434
      %v1460 = vpack.c.b16 %v1437, %v1436
      %v1461 = vpack.c.b16 %v1439, %v1438
      %v1462 = vpack.c.b16 %v1441, %v1440
      %v1463 = vpack.c.b16 %v1443, %v1442
      %v1464 = vpack.c.b16 %v1445, %v1444
      %v1465 = vpack.c.b16 %v1447, %v1446
      %v1466 = vpack.c.b16 %v1449, %v1448
      %v1467 = vpack.c.b16 %v1451, %v1450
      %1484 = vmatprep.subr.bf16.mxu0 0
      %1485 = vmatpush1.bf16.msra.mxu0 %v1188
      %1486 = vmatprep.subr.bf16.mxu0 0
      %1487 = vmatpush1.bf16.msra.mxu0 %v1189
      %1488 = vmatprep.subr.bf16.mxu0 0
      %1489 = vmatpush1.bf16.msra.mxu0 %v1190
      %1490 = vmatprep.subr.bf16.mxu0 0
      %1491 = vmatpush1.bf16.msra.mxu0 %v1191
      %1492 = vmatprep.subr.bf16.mxu0 0
      %1493 = vmatpush1.bf16.msra.mxu0 %v1192
      %1494 = vmatprep.subr.bf16.mxu0 0
      %1495 = vmatpush1.bf16.msra.mxu0 %v1193
      %1496 = vmatprep.subr.bf16.mxu0 0
      %1497 = vmatpush1.bf16.msra.mxu0 %v1194
      %1498 = vmatprep.subr.bf16.mxu0 0
      %1499 = vmatpush1.bf16.msra.mxu0 %v1195
      %1500 = vmatprep.subr.bf16.mxu0 0
      %1501 = vmatpush1.bf16.msra.mxu0 0
      %1502 = vmatprep.subr.bf16.mxu0 0
      %1503 = vmatpush1.bf16.msra.mxu0 0
      %1504 = vmatprep.subr.bf16.mxu0 0
      %1505 = vmatpush1.bf16.msra.mxu0 0
      %1506 = vmatprep.subr.bf16.mxu0 0
      %1507 = vmatpush1.bf16.msra.mxu0 0
      %1508 = vmatprep.subr.bf16.mxu0 0
      %1509 = vmatpush1.bf16.msra.mxu0 0
      %1510 = vmatprep.subr.bf16.mxu0 0
      %1511 = vmatpush1.bf16.msra.mxu0 0
      %1512 = vmatprep.subr.bf16.mxu0 0
      %1513 = vmatpush1.bf16.msra.mxu0 0
      %1514 = vmatprep.subr.bf16.mxu0 0
      %1515 = vmatpush1.bf16.msra.mxu0 0
      %1516 = vmatprep.mubr.bf16.mxu0 0
      %1517 = vmatmul.mubr.bf16.gmra.mrb[0].mxu0 %v1452
      %v1518 = vpop.f32.mrb[0].mxu0
      %v1519 = vadd.f32 %v1231, %v1518
      %v1520 = vpop.f32.mrb[0].mxu0
      %v1521 = vpop.f32.mrb[0].mxu0
      %v1522 = vadd.f32 %v1236, %v1521
      %v1523 = vpop.f32.mrb[0].mxu0
      %1524 = vmatprep.mubr.bf16.mxu0 0
      %1525 = vmatmul.mubr.bf16.gmra.mrb[0].mxu0 %v1453
      %v1526 = vpop.f32.mrb[0].mxu0
      %v1527 = vadd.f32 %v1241, %v1526
      %v1528 = vpop.f32.mrb[0].mxu0
      %v1529 = vpop.f32.mrb[0].mxu0
      %v1530 = vadd.f32 %v1246, %v1529
      %v1531 = vpop.f32.mrb[0].mxu0
      %1532 = vmatprep.mubr.bf16.mxu0 0
      %1533 = vmatmul.mubr.bf16.gmra.mrb[0].mxu0 %v1454
      %v1534 = vpop.f32.mrb[0].mxu0
      %v1535 = vadd.f32 %v1251, %v1534
      %v1536 = vpop.f32.mrb[0].mxu0
      %v1537 = vpop.f32.mrb[0].mxu0
      %v1538 = vadd.f32 %v1256, %v1537
      %v1539 = vpop.f32.mrb[0].mxu0
      %1540 = vmatprep.mubr.bf16.mxu0 0
      %1541 = vmatmul.mubr.bf16.gmra.mrb[0].mxu0 %v1455
      %v1542 = vpop.f32.mrb[0].mxu0
      %v1543 = vadd.f32 %v1261, %v1542
      %v1544 = vpop.f32.mrb[0].mxu0
      %v1545 = vpop.f32.mrb[0].mxu0
      %v1546 = vadd.f32 %v1266, %v1545
      %v1547 = vpop.f32.mrb[0].mxu0
      %1548 = vmatprep.mubr.bf16.mxu0 0
      %1549 = vmatmul.mubr.bf16.gmra.mrb[0].mxu0 %v1456
      %v1550 = vpop.f32.mrb[0].mxu0
      %v1551 = vadd.f32 %v1271, %v1550
      %v1552 = vpop.f32.mrb[0].mxu0
      %v1553 = vpop.f32.mrb[0].mxu0
      %v1554 = vadd.f32 %v1276, %v1553
      %v1555 = vpop.f32.mrb[0].mxu0
      %1556 = vmatprep.mubr.bf16.mxu0 0
      %1557 = vmatmul.mubr.bf16.gmra.mrb[0].mxu0 %v1457
      %v1558 = vpop.f32.mrb[0].mxu0
      %v1559 = vadd.f32 %v1281, %v1558
      %v1560 = vpop.f32.mrb[0].mxu0
      %v1561 = vpop.f32.mrb[0].mxu0
      %v1562 = vadd.f32 %v1286, %v1561
      %v1563 = vpop.f32.mrb[0].mxu0
      %1564 = vmatprep.mubr.bf16.mxu0 0
      %1565 = vmatmul.mubr.bf16.gmra.mrb[0].mxu0 %v1458
      %v1566 = vpop.f32.mrb[0].mxu0
      %v1567 = vadd.f32 %v1291, %v1566
      %v1568 = vpop.f32.mrb[0].mxu0
      %v1569 = vpop.f32.mrb[0].mxu0
      %v1570 = vadd.f32 %v1296, %v1569
      %v1571 = vpop.f32.mrb[0].mxu0
      %1572 = vmatprep.mubr.bf16.mxu0 0
      %1573 = vmatmul.mubr.bf16.gmra.mrb[0].mxu0 %v1459
      %v1574 = vpop.f32.mrb[0].mxu0
      %v1575 = vadd.f32 %v1301, %v1574
      %v1576 = vpop.f32.mrb[0].mxu0
      %v1577 = vpop.f32.mrb[0].mxu0
      %v1578 = vadd.f32 %v1306, %v1577
      %v1579 = vpop.f32.mrb[0].mxu0
      %1580 = vmatprep.mubr.bf16.mxu0 0
      %1581 = vmatmul.mubr.bf16.gmra.mrb[0].mxu0 %v1460
      %v1582 = vpop.f32.mrb[0].mxu0
      %v1583 = vadd.f32 %v1311, %v1582
      %v1584 = vpop.f32.mrb[0].mxu0
      %v1585 = vpop.f32.mrb[0].mxu0
      %v1586 = vadd.f32 %v1316, %v1585
      %v1587 = vpop.f32.mrb[0].mxu0
      %1588 = vmatprep.mubr.bf16.mxu0 0
      %1589 = vmatmul.mubr.bf16.gmra.mrb[0].mxu0 %v1461
      %v1590 = vpop.f32.mrb[0].mxu0
      %v1591 = vadd.f32 %v1321, %v1590
      %v1592 = vpop.f32.mrb[0].mxu0
      %v1593 = vpop.f32.mrb[0].mxu0
      %v1594 = vadd.f32 %v1326, %v1593
      %v1595 = vpop.f32.mrb[0].mxu0
      %1596 = vmatprep.mubr.bf16.mxu0 0
      %1597 = vmatmul.mubr.bf16.gmra.mrb[0].mxu0 %v1462
      %v1598 = vpop.f32.mrb[0].mxu0
      %v1599 = vadd.f32 %v1331, %v1598
      %v1600 = vpop.f32.mrb[0].mxu0
      %v1601 = vpop.f32.mrb[0].mxu0
      %v1602 = vadd.f32 %v1336, %v1601
      %v1603 = vpop.f32.mrb[0].mxu0
      %1604 = vmatprep.mubr.bf16.mxu0 0
      %1605 = vmatmul.mubr.bf16.gmra.mrb[0].mxu0 %v1463
      %v1606 = vpop.f32.mrb[0].mxu0
      %v1607 = vadd.f32 %v1341, %v1606
      %v1608 = vpop.f32.mrb[0].mxu0
      %v1609 = vpop.f32.mrb[0].mxu0
      %v1610 = vadd.f32 %v1346, %v1609
      %v1611 = vpop.f32.mrb[0].mxu0
      %1612 = vmatprep.mubr.bf16.mxu0 0
      %1613 = vmatmul.mubr.bf16.gmra.mrb[0].mxu0 %v1464
      %v1614 = vpop.f32.mrb[0].mxu0
      %v1615 = vadd.f32 %v1351, %v1614
      %v1616 = vpop.f32.mrb[0].mxu0
      %v1617 = vpop.f32.mrb[0].mxu0
      %v1618 = vadd.f32 %v1356, %v1617
      %v1619 = vpop.f32.mrb[0].mxu0
      %1620 = vmatprep.mubr.bf16.mxu0 0
      %1621 = vmatmul.mubr.bf16.gmra.mrb[0].mxu0 %v1465
      %v1622 = vpop.f32.mrb[0].mxu0
      %v1623 = vadd.f32 %v1361, %v1622
      %v1624 = vpop.f32.mrb[0].mxu0
      %v1625 = vpop.f32.mrb[0].mxu0
      %v1626 = vadd.f32 %v1366, %v1625
      %v1627 = vpop.f32.mrb[0].mxu0
      %1628 = vmatprep.mubr.bf16.mxu0 0
      %1629 = vmatmul.mubr.bf16.gmra.mrb[0].mxu0 %v1466
      %v1630 = vpop.f32.mrb[0].mxu0
      %v1631 = vadd.f32 %v1371, %v1630
      %v1632 = vpop.f32.mrb[0].mxu0
      %v1633 = vpop.f32.mrb[0].mxu0
      %v1634 = vadd.f32 %v1376, %v1633
      %v1635 = vpop.f32.mrb[0].mxu0
      %1636 = vmatprep.mubr.bf16.mxu0 0
      %1637 = vmatmul.mubr.bf16.gmra.mrb[0].mxu0 %v1467
      %v1638 = vpop.f32.mrb[0].mxu0
      %v1639 = vadd.f32 %v1381, %v1638
      %v1640 = vpop.f32.mrb[0].mxu0
      %v1641 = vpop.f32.mrb[0].mxu0
      %v1642 = vadd.f32 %v1386, %v1641
      %v1643 = vpop.f32.mrb[0].mxu0
      %1644 = vdwg.mxu0
      %v1645 = vmax.f32 %v1519, 0.0
      %v1646 = vmax.f32 %v1522, 0.0
      %v1647 = vmax.f32 %v1527, 0.0
      %v1648 = vmax.f32 %v1530, 0.0
      %v1649 = vmax.f32 %v1535, 0.0
      %v1650 = vmax.f32 %v1538, 0.0
      %v1651 = vmax.f32 %v1543, 0.0
      %v1652 = vmax.f32 %v1546, 0.0
      %v1653 = vmax.f32 %v1551, 0.0
      %v1654 = vmax.f32 %v1554, 0.0
      %v1655 = vmax.f32 %v1559, 0.0
      %v1656 = vmax.f32 %v1562, 0.0
      %v1657 = vmax.f32 %v1567, 0.0
      %v1658 = vmax.f32 %v1570, 0.0
      %v1659 = vmax.f32 %v1575, 0.0
      %v1660 = vmax.f32 %v1578, 0.0
      %v1661 = vmax.f32 %v1583, 0.0
      %v1662 = vmax.f32 %v1586, 0.0
      %v1663 = vmax.f32 %v1591, 0.0
      %v1664 = vmax.f32 %v1594, 0.0
      %v1665 = vmax.f32 %v1599, 0.0
      %v1666 = vmax.f32 %v1602, 0.0
      %v1667 = vmax.f32 %v1607, 0.0
      %v1668 = vmax.f32 %v1610, 0.0
      %v1669 = vmax.f32 %v1615, 0.0
      %v1670 = vmax.f32 %v1618, 0.0
      %v1671 = vmax.f32 %v1623, 0.0
      %v1672 = vmax.f32 %v1626, 0.0
      %v1673 = vmax.f32 %v1631, 0.0
      %v1674 = vmax.f32 %v1634, 0.0
      %v1675 = vmax.f32 %v1639, 0.0
      %v1676 = vmax.f32 %v1642, 0.0
      %v1677 = vlaneseq
      %v1678 = vand.u32 %v1677, 127
      %s1679 = smul.u32 %s23, 128
      %v1680 = vstv %s1679
      %v1681 = vadd.s32 %v1678, %v1680
      %vm1682 = vcmp.lt.s32.totalorder %v1681, 320
      %v1683 = vsel %vm1682, 1, 0
      %vm1684 = vcmp.eq.s32.totalorder %v1683, 1
      %v1685 = vsel %vm1684, %v1645, -inf
      %v1686 = vsel %vm1684, %v1646, -inf
      %v1687 = vsel %vm1684, %v1647, -inf
      %v1688 = vsel %vm1684, %v1648, -inf
      %v1689 = vsel %vm1684, %v1649, -inf
      %v1690 = vsel %vm1684, %v1650, -inf
      %v1691 = vsel %vm1684, %v1651, -inf
      %v1692 = vsel %vm1684, %v1652, -inf
      %v1693 = vsel %vm1684, %v1653, -inf
      %v1694 = vsel %vm1684, %v1654, -inf
      %v1695 = vsel %vm1684, %v1655, -inf
      %v1696 = vsel %vm1684, %v1656, -inf
      %v1697 = vsel %vm1684, %v1657, -inf
      %v1698 = vsel %vm1684, %v1658, -inf
      %v1699 = vsel %vm1684, %v1659, -inf
      %v1700 = vsel %vm1684, %v1660, -inf
      %v1701 = vsel %vm1684, %v1661, -inf
      %v1702 = vsel %vm1684, %v1662, -inf
      %v1703 = vsel %vm1684, %v1663, -inf
      %v1704 = vsel %vm1684, %v1664, -inf
      %v1705 = vsel %vm1684, %v1665, -inf
      %v1706 = vsel %vm1684, %v1666, -inf
      %v1707 = vsel %vm1684, %v1667, -inf
      %v1708 = vsel %vm1684, %v1668, -inf
      %v1709 = vsel %vm1684, %v1669, -inf
      %v1710 = vsel %vm1684, %v1670, -inf
      %v1711 = vsel %vm1684, %v1671, -inf
      %v1712 = vsel %vm1684, %v1672, -inf
      %v1713 = vsel %vm1684, %v1673, -inf
      %v1714 = vsel %vm1684, %v1674, -inf
      %v1715 = vsel %vm1684, %v1675, -inf
      %v1716 = vsel %vm1684, %v1676, -inf
      %1717 = vmax.xlane.f32.xlu0 %v1685
      %v1718 = vpop.xlane.xlu0 %1717
      %1719 = vmax.xlane.f32.xlu0 %v1686
      %v1720 = vpop.xlane.xlu0 %1719
      %1721 = vmax.xlane.f32.xlu0 %v1687
      %v1722 = vpop.xlane.xlu0 %1721
      %1723 = vmax.xlane.f32.xlu0 %v1688
      %v1724 = vpop.xlane.xlu0 %1723
      %1725 = vmax.xlane.f32.xlu0 %v1689
      %v1726 = vpop.xlane.xlu0 %1725
      %1727 = vmax.xlane.f32.xlu0 %v1690
      %v1728 = vpop.xlane.xlu0 %1727
      %1729 = vmax.xlane.f32.xlu0 %v1691
      %v1730 = vpop.xlane.xlu0 %1729
      %1731 = vmax.xlane.f32.xlu0 %v1692
      %v1732 = vpop.xlane.xlu0 %1731
      %1733 = vmax.xlane.f32.xlu0 %v1693
      %v1734 = vpop.xlane.xlu0 %1733
      %1735 = vmax.xlane.f32.xlu0 %v1694
      %v1736 = vpop.xlane.xlu0 %1735
      %1737 = vmax.xlane.f32.xlu0 %v1695
      %v1738 = vpop.xlane.xlu0 %1737
      %1739 = vmax.xlane.f32.xlu0 %v1696
      %v1740 = vpop.xlane.xlu0 %1739
      %1741 = vmax.xlane.f32.xlu0 %v1697
      %v1742 = vpop.xlane.xlu0 %1741
      %1743 = vmax.xlane.f32.xlu0 %v1698
      %v1744 = vpop.xlane.xlu0 %1743
      %1745 = vmax.xlane.f32.xlu0 %v1699
      %v1746 = vpop.xlane.xlu0 %1745
      %1747 = vmax.xlane.f32.xlu0 %v1700
      %v1748 = vpop.xlane.xlu0 %1747
      %1749 = vmax.xlane.f32.xlu0 %v1701
      %v1750 = vpop.xlane.xlu0 %1749
      %1751 = vmax.xlane.f32.xlu0 %v1702
      %v1752 = vpop.xlane.xlu0 %1751
      %1753 = vmax.xlane.f32.xlu0 %v1703
      %v1754 = vpop.xlane.xlu0 %1753
      %1755 = vmax.xlane.f32.xlu0 %v1704
      %v1756 = vpop.xlane.xlu0 %1755
      %1757 = vmax.xlane.f32.xlu0 %v1705
      %v1758 = vpop.xlane.xlu0 %1757
      %1759 = vmax.xlane.f32.xlu0 %v1706
      %v1760 = vpop.xlane.xlu0 %1759
      %1761 = vmax.xlane.f32.xlu0 %v1707
      %v1762 = vpop.xlane.xlu0 %1761
      %1763 = vmax.xlane.f32.xlu0 %v1708
      %v1764 = vpop.xlane.xlu0 %1763
      %1765 = vmax.xlane.f32.xlu0 %v1709
      %v1766 = vpop.xlane.xlu0 %1765
      %1767 = vmax.xlane.f32.xlu0 %v1710
      %v1768 = vpop.xlane.xlu0 %1767
      %1769 = vmax.xlane.f32.xlu0 %v1711
      %v1770 = vpop.xlane.xlu0 %1769
      %1771 = vmax.xlane.f32.xlu0 %v1712
      %v1772 = vpop.xlane.xlu0 %1771
      %1773 = vmax.xlane.f32.xlu0 %v1713
      %v1774 = vpop.xlane.xlu0 %1773
      %1775 = vmax.xlane.f32.xlu0 %v1714
      %v1776 = vpop.xlane.xlu0 %1775
      %1777 = vmax.xlane.f32.xlu0 %v1715
      %v1778 = vpop.xlane.xlu0 %1777
      %1779 = vmax.xlane.f32.xlu0 %v1716
      %v1780 = vpop.xlane.xlu0 %1779
      %p1781 = scmp.eq.s32.totalorder %s23, 0
      // Predicated region
      $region49: #{tpu_custom_call.1} parent=47 // pred_check
        %p1782 = pneg %p1781
      $region50: #{tpu_custom_call.1} parent=47 // pred_check_branch
        %1784 = sbr.rel (%p1782) target = $region52
      $region51: #{tpu_custom_call.1} parent=47 // pred_region
        %vm1785 = vcmask 7168
        %1786 = vst.msk [vmem:[%s301] sm:$0xff] %vm1785, %v1718
        %1787 = vst.msk [vmem:[%s301 + $0x8] sm:$0xff] %vm1785, %v1720
        %1788 = vst.msk [vmem:[%s301 + $0x10] sm:$0xff] %vm1785, %v1722
        %1789 = vst.msk [vmem:[%s301 + $0x18] sm:$0xff] %vm1785, %v1724
        %1790 = vst.msk [vmem:[%s301 + $0x20] sm:$0xff] %vm1785, %v1726
        %1791 = vst.msk [vmem:[%s301 + $0x28] sm:$0xff] %vm1785, %v1728
        %1792 = vst.msk [vmem:[%s301 + $0x30] sm:$0xff] %vm1785, %v1730
        %1793 = vst.msk [vmem:[%s301 + $0x38] sm:$0xff] %vm1785, %v1732
        %1794 = vst.msk [vmem:[%s301 + $0x40] sm:$0xff] %vm1785, %v1734
        %1795 = vst.msk [vmem:[%s301 + $0x48] sm:$0xff] %vm1785, %v1736
        %1796 = vst.msk [vmem:[%s301 + $0x50] sm:$0xff] %vm1785, %v1738
        %1797 = vst.msk [vmem:[%s301 + $0x58] sm:$0xff] %vm1785, %v1740
        %1798 = vst.msk [vmem:[%s301 + $0x60] sm:$0xff] %vm1785, %v1742
        %1799 = vst.msk [vmem:[%s301 + $0x68] sm:$0xff] %vm1785, %v1744
        %1800 = vst.msk [vmem:[%s301 + $0x70] sm:$0xff] %vm1785, %v1746
        %1801 = vst.msk [vmem:[%s301 + $0x78] sm:$0xff] %vm1785, %v1748
        %1802 = vst.msk [vmem:[%s301 + $0x80] sm:$0xff] %vm1785, %v1750
        %1803 = vst.msk [vmem:[%s301 + $0x88] sm:$0xff] %vm1785, %v1752
        %1804 = vst.msk [vmem:[%s301 + $0x90] sm:$0xff] %vm1785, %v1754
        %1805 = vst.msk [vmem:[%s301 + $0x98] sm:$0xff] %vm1785, %v1756
        %1806 = vst.msk [vmem:[%s301 + $0xa0] sm:$0xff] %vm1785, %v1758
        %1807 = vst.msk [vmem:[%s301 + $0xa8] sm:$0xff] %vm1785, %v1760
        %1808 = vst.msk [vmem:[%s301 + $0xb0] sm:$0xff] %vm1785, %v1762
        %1809 = vst.msk [vmem:[%s301 + $0xb8] sm:$0xff] %vm1785, %v1764
        %1810 = vst.msk [vmem:[%s301 + $0xc0] sm:$0xff] %vm1785, %v1766
        %1811 = vst.msk [vmem:[%s301 + $0xc8] sm:$0xff] %vm1785, %v1768
        %1812 = vst.msk [vmem:[%s301 + $0xd0] sm:$0xff] %vm1785, %v1770
        %1813 = vst.msk [vmem:[%s301 + $0xd8] sm:$0xff] %vm1785, %v1772
        %1814 = vst.msk [vmem:[%s301 + $0xe0] sm:$0xff] %vm1785, %v1774
        %1815 = vst.msk [vmem:[%s301 + $0xe8] sm:$0xff] %vm1785, %v1776
        %1816 = vst.msk [vmem:[%s301 + $0xf0] sm:$0xff] %vm1785, %v1778
        %1817 = vst.msk [vmem:[%s301 + $0xf8] sm:$0xff] %vm1785, %v1780
      $region52: #{tpu_custom_call.1} parent=47 // pred_fallthru
        _
      %p1818 = scmp.ne.s32.totalorder %s23, 0
      // Predicated region
      $region53: #{tpu_custom_call.1} parent=47 // pred_check
        %p1819 = pneg %p1818
      $region54: #{tpu_custom_call.1} parent=47 // pred_check_branch
        %1821 = sbr.rel (%p1819) target = $region56
      $region55: #{tpu_custom_call.1} parent=47 // pred_region
        %v1822 = vld [vmem:[%s301] sm:$0xff]
        %v1823 = vld [vmem:[%s301 + $0x8] sm:$0xff]
        %v1824 = vld [vmem:[%s301 + $0x10] sm:$0xff]
        %v1825 = vld [vmem:[%s301 + $0x18] sm:$0xff]
        %v1826 = vld [vmem:[%s301 + $0x20] sm:$0xff]
        %v1827 = vld [vmem:[%s301 + $0x28] sm:$0xff]
        %v1828 = vld [vmem:[%s301 + $0x30] sm:$0xff]
        %v1829 = vld [vmem:[%s301 + $0x38] sm:$0xff]
        %v1830 = vld [vmem:[%s301 + $0x40] sm:$0xff]
        %v1831 = vld [vmem:[%s301 + $0x48] sm:$0xff]
        %v1832 = vld [vmem:[%s301 + $0x50] sm:$0xff]
        %v1833 = vld [vmem:[%s301 + $0x58] sm:$0xff]
        %v1834 = vld [vmem:[%s301 + $0x60] sm:$0xff]
        %v1835 = vld [vmem:[%s301 + $0x68] sm:$0xff]
        %v1836 = vld [vmem:[%s301 + $0x70] sm:$0xff]
        %v1837 = vld [vmem:[%s301 + $0x78] sm:$0xff]
        %v1838 = vld [vmem:[%s301 + $0x80] sm:$0xff]
        %v1839 = vld [vmem:[%s301 + $0x88] sm:$0xff]
        %v1840 = vld [vmem:[%s301 + $0x90] sm:$0xff]
        %v1841 = vld [vmem:[%s301 + $0x98] sm:$0xff]
        %v1842 = vld [vmem:[%s301 + $0xa0] sm:$0xff]
        %v1843 = vld [vmem:[%s301 + $0xa8] sm:$0xff]
        %v1844 = vld [vmem:[%s301 + $0xb0] sm:$0xff]
        %v1845 = vld [vmem:[%s301 + $0xb8] sm:$0xff]
        %v1846 = vld [vmem:[%s301 + $0xc0] sm:$0xff]
        %v1847 = vld [vmem:[%s301 + $0xc8] sm:$0xff]
        %v1848 = vld [vmem:[%s301 + $0xd0] sm:$0xff]
        %v1849 = vld [vmem:[%s301 + $0xd8] sm:$0xff]
        %v1850 = vld [vmem:[%s301 + $0xe0] sm:$0xff]
        %v1851 = vld [vmem:[%s301 + $0xe8] sm:$0xff]
        %v1852 = vld [vmem:[%s301 + $0xf0] sm:$0xff]
        %v1853 = vld [vmem:[%s301 + $0xf8] sm:$0xff]
        %v1854 = vmax.f32 %v1822, %v1718
        %v1855 = vmax.f32 %v1823, %v1720
        %v1856 = vmax.f32 %v1824, %v1722
        %v1857 = vmax.f32 %v1825, %v1724
        %v1858 = vmax.f32 %v1826, %v1726
        %v1859 = vmax.f32 %v1827, %v1728
        %v1860 = vmax.f32 %v1828, %v1730
        %v1861 = vmax.f32 %v1829, %v1732
        %v1862 = vmax.f32 %v1830, %v1734
        %v1863 = vmax.f32 %v1831, %v1736
        %v1864 = vmax.f32 %v1832, %v1738
        %v1865 = vmax.f32 %v1833, %v1740
        %v1866 = vmax.f32 %v1834, %v1742
        %v1867 = vmax.f32 %v1835, %v1744
        %v1868 = vmax.f32 %v1836, %v1746
        %v1869 = vmax.f32 %v1837, %v1748
        %v1870 = vmax.f32 %v1838, %v1750
        %v1871 = vmax.f32 %v1839, %v1752
        %v1872 = vmax.f32 %v1840, %v1754
        %v1873 = vmax.f32 %v1841, %v1756
        %v1874 = vmax.f32 %v1842, %v1758
        %v1875 = vmax.f32 %v1843, %v1760
        %v1876 = vmax.f32 %v1844, %v1762
        %v1877 = vmax.f32 %v1845, %v1764
        %v1878 = vmax.f32 %v1846, %v1766
        %v1879 = vmax.f32 %v1847, %v1768
        %v1880 = vmax.f32 %v1848, %v1770
        %v1881 = vmax.f32 %v1849, %v1772
        %v1882 = vmax.f32 %v1850, %v1774
        %v1883 = vmax.f32 %v1851, %v1776
        %v1884 = vmax.f32 %v1852, %v1778
        %v1885 = vmax.f32 %v1853, %v1780
        %vm1886 = vcmask 7168
        %1887 = vst.msk [vmem:[%s301] sm:$0xff] %vm1886, %v1854
        %1888 = vst.msk [vmem:[%s301 + $0x8] sm:$0xff] %vm1886, %v1855
        %1889 = vst.msk [vmem:[%s301 + $0x10] sm:$0xff] %vm1886, %v1856
        %1890 = vst.msk [vmem:[%s301 + $0x18] sm:$0xff] %vm1886, %v1857
        %1891 = vst.msk [vmem:[%s301 + $0x20] sm:$0xff] %vm1886, %v1858
        %1892 = vst.msk [vmem:[%s301 + $0x28] sm:$0xff] %vm1886, %v1859
        %1893 = vst.msk [vmem:[%s301 + $0x30] sm:$0xff] %vm1886, %v1860
        %1894 = vst.msk [vmem:[%s301 + $0x38] sm:$0xff] %vm1886, %v1861
        %1895 = vst.msk [vmem:[%s301 + $0x40] sm:$0xff] %vm1886, %v1862
        %1896 = vst.msk [vmem:[%s301 + $0x48] sm:$0xff] %vm1886, %v1863
        %1897 = vst.msk [vmem:[%s301 + $0x50] sm:$0xff] %vm1886, %v1864
        %1898 = vst.msk [vmem:[%s301 + $0x58] sm:$0xff] %vm1886, %v1865
        %1899 = vst.msk [vmem:[%s301 + $0x60] sm:$0xff] %vm1886, %v1866
        %1900 = vst.msk [vmem:[%s301 + $0x68] sm:$0xff] %vm1886, %v1867
        %1901 = vst.msk [vmem:[%s301 + $0x70] sm:$0xff] %vm1886, %v1868
        %1902 = vst.msk [vmem:[%s301 + $0x78] sm:$0xff] %vm1886, %v1869
        %1903 = vst.msk [vmem:[%s301 + $0x80] sm:$0xff] %vm1886, %v1870
        %1904 = vst.msk [vmem:[%s301 + $0x88] sm:$0xff] %vm1886, %v1871
        %1905 = vst.msk [vmem:[%s301 + $0x90] sm:$0xff] %vm1886, %v1872
        %1906 = vst.msk [vmem:[%s301 + $0x98] sm:$0xff] %vm1886, %v1873
        %1907 = vst.msk [vmem:[%s301 + $0xa0] sm:$0xff] %vm1886, %v1874
        %1908 = vst.msk [vmem:[%s301 + $0xa8] sm:$0xff] %vm1886, %v1875
        %1909 = vst.msk [vmem:[%s301 + $0xb0] sm:$0xff] %vm1886, %v1876
        %1910 = vst.msk [vmem:[%s301 + $0xb8] sm:$0xff] %vm1886, %v1877
        %1911 = vst.msk [vmem:[%s301 + $0xc0] sm:$0xff] %vm1886, %v1878
        %1912 = vst.msk [vmem:[%s301 + $0xc8] sm:$0xff] %vm1886, %v1879
        %1913 = vst.msk [vmem:[%s301 + $0xd0] sm:$0xff] %vm1886, %v1880
        %1914 = vst.msk [vmem:[%s301 + $0xd8] sm:$0xff] %vm1886, %v1881
        %1915 = vst.msk [vmem:[%s301 + $0xe0] sm:$0xff] %vm1886, %v1882
        %1916 = vst.msk [vmem:[%s301 + $0xe8] sm:$0xff] %vm1886, %v1883
        %1917 = vst.msk [vmem:[%s301 + $0xf0] sm:$0xff] %vm1886, %v1884
        %1918 = vst.msk [vmem:[%s301 + $0xf8] sm:$0xff] %vm1886, %v1885
      $region56: #{tpu_custom_call.1} parent=47 // pred_fallthru
        _
      %p1919 = scmp.lt.s32.totalorder %s22, 1
      %s1920 = scalar_select %p1919, %s22, 1
      %s1921 = smul.addr %s1920, 32
      %s1922 = smul.addr %s1921, 8
      %s1923 = scalar_lea.vmem %s7, %s1922
      // Predicated region
      $region57: #{tpu_custom_call.1} parent=47 // pred_check
        %p1924 = pneg %p202
      $region58: #{tpu_custom_call.1} parent=47 // pred_check_branch
        %1926 = sbr.rel (%p1924) target = $region60
      $region59: #{tpu_custom_call.1} parent=47 // pred_region
        _
      $region60: #{tpu_custom_call.1} parent=47 // pred_fallthru
        _
    $region48: #{tpu_custom_call.1} parent=5 // pred_fallthru
      _
    %p1927 = scmp.le.s32.totalorder 2, %s13
    // Predicated region
    $region61: #{tpu_custom_call.1} parent=5 // pred_check
      %p1928 = pneg %p1927
    $region62: #{tpu_custom_call.1} parent=5 // pred_check_branch
      %1930 = sbr.rel (%p1928) target = $region64
    $region63: #{tpu_custom_call.1} parent=5 // pred_region
      %s1931 = ssub.s32 %s13, 2
      // Predicated region
      $region65: #{tpu_custom_call.1} parent=63 // pred_check
        %p1932 = pneg %p208
      $region66: #{tpu_custom_call.1} parent=63 // pred_check_branch
        %1934 = sbr.rel (%p1932) target = $region68
      $region67: #{tpu_custom_call.1} parent=63 // pred_region
        %p1935 = scmp.lt.s32.totalorder %s24, 1
        %s1936 = scalar_select %p1935, %s24, 1
        %s1937 = smul.addr %s1936, 32
        %s1938 = smul.addr %s1937, 8
        %s1939 = scalar_lea.vmem %s7, %s1938
      $region68: #{tpu_custom_call.1} parent=63 // pred_fallthru
        _
    $region64: #{tpu_custom_call.1} parent=5 // pred_fallthru
      _
  $region6: #{tpu_custom_call.1} parent=0 // loop_footer
    %s17 = sadd.s32 1, %s13
  $region7: #{tpu_custom_call.1} parent=0 // loop_footer_branch
    %12 = sbr.rel target = $region3
  $region8: #{tpu_custom_call.1} parent=0 // loop_exit
    _

</llo_original>
